<compile_context>
chip_gen: v6e
topology: v6e:2x2x1
jax: 0.10.0
libtpu: 0.0.40
codegen_flags: <defaults>
</compile_context>

<pallas_src>
import functools

import jax
import jax.numpy as jnp
from jax.experimental import pallas as pl
from jax.experimental.pallas import tpu as pltpu

LANE = 128  # pixel-tile width (lanes) and padding unit for the FC output


# ------------------------------ Pallas kernel -------------------------------

def _fused_kernel(x_ref, wcat_ref, bias_ref, wfc_ref, bfc_ref, o_ref, *, batch):
    # x_ref   : (B, C, LANE)     f32   one 128-pixel tile of both branches' inputs
    # wcat_ref: (F, C)           bf16  block-diagonal merged branch weight
    # bias_ref: (F, LANE)        f32   pre-broadcast branch bias
    # wfc_ref : (F, LANE, Op)    bf16  pre-permuted FC weight slab for this tile
    # bfc_ref : (1, Op)          f32   FC bias
    # o_ref   : (B, Op)          f32   resident accumulator across pixel tiles
    p = pl.program_id(0)

    @pl.when(p == 0)
    def _():
        o_ref[...] = jnp.broadcast_to(bfc_ref[...], o_ref.shape)

    wcat = wcat_ref[...]
    bias = bias_ref[...]
    wfc = wfc_ref[...]

    # Branch 1x1 convs + bias + ReLU: one merged MXU push per batch row.
    hs = []
    for b in range(batch):                       # B is tiny & static -> unrolled
        xb = x_ref[b].astype(jnp.bfloat16)                            # (C, LANE)
        hb = jnp.dot(wcat, xb, preferred_element_type=jnp.float32)    # (F, LANE)
        hs.append(jnp.maximum(hb + bias, 0.0))                        # f32 epilogue
    h = jnp.stack(hs, axis=1).astype(jnp.bfloat16)                    # (F, B, LANE)

    # Shared FC for this pixel tile: batched matmul over the feature axis,
    # then reduce features.  (f, p) row order matches torch's .view + cat.
    partial = jnp.einsum("fbt,fto->fbo", h, wfc,
                         preferred_element_type=jnp.float32)          # (F, B, Op)
    o_ref[...] += partial.sum(axis=0)


# ------------------------------ kernel wrapper -------------------------------

def fused_forward_pallas(x_cat, wcat, bias, wfc_p, bfc_p):
    """x_cat: (B, C, HWp) f32 -> (B, Op) f32 (padded FC output)."""
    B, C, HWp = x_cat.shape
    F, _, Op = wfc_p.shape
    n_pt = HWp // LANE
    flops = 2 * B * HWp * F * C + 2 * B * F * HWp * Op
    bytes_accessed = (x_cat.size * 4 + wcat.size * 2 + bias.size * 4
                      + wfc_p.size * 2 + bfc_p.size * 4 + B * Op * 4)
    return pl.pallas_call(
        functools.partial(_fused_kernel, batch=B),
        out_shape=jax.ShapeDtypeStruct((B, Op), jnp.float32),
        grid_spec=pltpu.PrefetchScalarGridSpec(
            num_scalar_prefetch=0,
            grid=(n_pt,),
            in_specs=[
                pl.BlockSpec((B, C, LANE), lambda k: (0, 0, k)),
                pl.BlockSpec((F, C), lambda k: (0, 0)),
                pl.BlockSpec((F, LANE), lambda k: (0, 0)),
                pl.BlockSpec((F, LANE, Op), lambda k: (0, k, 0)),
                pl.BlockSpec((1, Op), lambda k: (0, 0)),
            ],
            out_specs=pl.BlockSpec((B, Op), lambda k: (0, 0)),
        ),
        compiler_params=pltpu.CompilerParams(
            dimension_semantics=("arbitrary",)),
        cost_estimate=pl.CostEstimate(flops=int(flops), transcendentals=0,
                                      bytes_accessed=int(bytes_accessed)),
    )(x_cat, wcat, bias, wfc_p, bfc_p)


# ------------------- parameter packing (one-time setup) ---------------------

def pack_params(params, H, W):
    """Fold flatten/concat ordering, branch merging, bias broadcasting and
    lane padding into the weights once, off the forward hot path."""
    w1, b1 = params["w1"], params["b1"]      # (F1, C1), (F1,)
    w2, b2 = params["w2"], params["b2"]      # (F2, C2), (F2,)
    wfc, bfc = params["wfc"], params["bfc"]  # (O, D),  (O,)
    F1, C1 = w1.shape
    F2, C2 = w2.shape
    O, D = wfc.shape
    F, C = F1 + F2, C1 + C2
    HW = H * W
    assert D == F * HW, "fc in_features must equal (F1+F2)*H*W"
    HWp = ((HW + LANE - 1) // LANE) * LANE
    Op = ((O + LANE - 1) // LANE) * LANE

    # Block-diagonal merged branch weight: one MXU push covers both branches,
    # each branch's features only see its own channels (zeros elsewhere).
    wcat = jnp.zeros((F, C), jnp.float32)
    wcat = wcat.at[:F1, :C1].set(w1).at[F1:, C1:].set(w2).astype(jnp.bfloat16)

    # Branch bias pre-broadcast to a full 128-lane tile (pure VALU add).
    bias = jnp.broadcast_to(jnp.concatenate([b1, b2]).astype(jnp.float32)[:, None],
                            (F, LANE)).astype(jnp.float32)

    # FC weight pre-permuted to (F, HWp, Op): entry [f, p, o] is torch's
    # Wfc[o, f*HW + p] (identical to NCHW .view(B,-1) + cat column order);
    # padded pixel rows / output columns are zero, so padding contributes 0.
    w3 = wfc.reshape(O, F, HW).transpose(1, 2, 0)               # (F, HW, O)
    wfc_p = jnp.zeros((F, HWp, Op), jnp.float32).at[:, :HW, :O].set(w3)
    wfc_p = wfc_p.astype(jnp.bfloat16)
    bfc_p = jnp.zeros((1, Op), jnp.float32).at[:, :O].set(bfc[None, :])
    return dict(wcat=wcat, bias=bias, wfc_p=wfc_p, bfc_p=bfc_p,
                F=F, C=C, HW=HW, HWp=HWp, O=O, Op=Op)


# ------------------------- model forward (JAX glue) --------------------------

@functools.partial(jax.jit, static_argnames=("O",))
def two_parallel_models_forward(x1, x2, wcat, bias, wfc_p, bfc_p, *, O):
    """Pallas implementation of twoParallelModels.forward.

    x1: (B, C1, H, W) NCHW f32, x2: (B, C2, H, W) NCHW f32.
    """
    B, C1, H, W = x1.shape
    _, C2, _, _ = x2.shape
    HW = H * W
    HWp = wfc_p.shape[1]
    # Free reshapes + one tiny channel concat (f32 stays f32; the kernel casts
    # to bf16 after the DMA, avoiding an extra HBM cast pass).
    x_cat = jnp.concatenate([x1.reshape(B, C1, HW), x2.reshape(B, C2, HW)],
                            axis=1)
    if HWp != HW:  # pad pixel axis to a 128-lane multiple (zero FC-weight rows)
        x_cat = jnp.pad(x_cat, ((0, 0), (0, 0), (0, HWp - HW)))
    out_p = fused_forward_pallas(x_cat, wcat, bias, wfc_p, bfc_p)
    return out_p[:, :O]


# --------------------------- pure-JAX reference ------------------------------

def reference_forward(x1, x2, params):
    # Mirrors the kernel's dtype handling (bf16 MXU inputs, bf16 intermediate
    # feature map, f32 accumulation & epilogues).
    q = lambda a: a.astype(jnp.bfloat16).astype(jnp.float32)
    w1, b1 = params["w1"], params["b1"]
    w2, b2 = params["w2"], params["b2"]
    wfc, bfc = params["wfc"], params["bfc"]
    B = x1.shape[0]
    f1 = jnp.einsum("fc,bchw->bfhw", q(w1), q(x1),
                    precision=jax.lax.Precision.HIGHEST)
    f1 = jnp.maximum(f1 + b1[None, :, None, None], 0.0).reshape(B, -1)
    f2 = jnp.einsum("fc,bchw->bfhw", q(w2), q(x2),
                    precision=jax.lax.Precision.HIGHEST)
    f2 = jnp.maximum(f2 + b2[None, :, None, None], 0.0).reshape(B, -1)
    h = q(jnp.concatenate([f1, f2], axis=1))
    return jnp.dot(h, q(wfc).T,
                   precision=jax.lax.Precision.HIGHEST) + bfc[None, :]


# ---------------------------------- main -------------------------------------

if __name__ == "__main__":
    B, H, W = 2, 16, 16
    C1, C2 = 4, 3
    F1, F2 = 8, 8
    O = 10
    D = (F1 + F2) * H * W

    key = jax.random.PRNGKey(0)
    k = jax.random.split(key, 8)
    x1 = jax.random.normal(k[0], (B, C1, H, W), jnp.float32)
    x2 = jax.random.normal(k[1], (B, C2, H, W), jnp.float32)
    params = {
        "w1": jax.random.normal(k[2], (F1, C1), jnp.float32) * 0.1,
        "b1": jax.random.normal(k[3], (F1,), jnp.float32) * 0.1,
        "w2": jax.random.normal(k[4], (F2, C2), jnp.float32) * 0.1,
        "b2": jax.random.normal(k[5], (F2,), jnp.float32) * 0.1,
        "wfc": jax.random.normal(k[6], (O, D), jnp.float32) * 0.05,
        "bfc": jax.random.normal(k[7], (O,), jnp.float32) * 0.05,
    }

    packed = pack_params(params, H, W)
    out = two_parallel_models_forward(
        x1, x2, packed["wcat"], packed["bias"], packed["wfc_p"],
        packed["bfc_p"], O=packed["O"])
    out = jax.block_until_ready(out)

    ref = reference_forward(x1, x2, params)
    assert out.shape == (B, O), out.shape
    max_err = float(jnp.max(jnp.abs(out - ref)))
    assert jnp.allclose(out, ref, atol=2e-3, rtol=2e-3), (
        f"mismatch vs reference: max abs err {max_err}")

    print("KERNEL_OK")
</pallas_src>

<mosaic_0001>
module attributes {stable_mosaic.version = 11 : i64} {
  func.func @_fused_kernel(%arg0: i32, %arg1: memref<2x7x128xf32, #tpu.memory_space<vmem>>, %arg2: memref<16x7xbf16, #tpu.memory_space<vmem>>, %arg3: memref<16x128xf32, #tpu.memory_space<vmem>>, %arg4: memref<16x128x128xbf16, #tpu.memory_space<vmem>>, %arg5: memref<1x128xf32, #tpu.memory_space<vmem>>, %arg6: memref<2x128xf32, #tpu.memory_space<vmem>>) attributes {dimension_semantics = [#tpu.dimension_semantics<arbitrary>], iteration_bounds = array<i64: 2>, scalar_prefetch = 0 : i64, scratch_operands = 0 : i64, tpu.core_type = #tpu.core_type<tc>, window_params = [{transform_indices = @transform_0, window_bounds = array<i64: 2, 7, 128>}, {pipeline_mode = #tpu.pipeline_mode<synchronous>, transform_indices = @transform_1, window_bounds = array<i64: 16, 7>}, {pipeline_mode = #tpu.pipeline_mode<synchronous>, transform_indices = @transform_2, window_bounds = array<i64: 16, 128>}, {transform_indices = @transform_3, window_bounds = array<i64: 16, 128, 128>}, {pipeline_mode = #tpu.pipeline_mode<synchronous>, transform_indices = @transform_4, window_bounds = array<i64: 1, 128>}, {pipeline_mode = #tpu.pipeline_mode<synchronous>, transform_indices = @transform_5, window_bounds = array<i64: 2, 128>}]} {
    %c0_i32 = arith.constant 0 : i32
    %0 = arith.cmpi eq, %arg0, %c0_i32 : i32
    %1 = arith.extui %0 : i1 to i32
    %c0_i32_0 = arith.constant 0 : i32
    %2 = arith.cmpi ne, %1, %c0_i32_0 : i32
    scf.if %2 {
      %c0_21 = arith.constant 0 : index
      %c0_22 = arith.constant 0 : index
      %29 = vector.load %arg5[%c0_21, %c0_22] : memref<1x128xf32, #tpu.memory_space<vmem>>, vector<1x128xf32>
      %30 = vector.shape_cast %29 : vector<1x128xf32> to vector<1x128xf32>
      %31 = vector.broadcast %30 : vector<1x128xf32> to vector<2x128xf32>
      %c0_23 = arith.constant 0 : index
      %c0_24 = arith.constant 0 : index
      %32 = vector.load %arg6[%c0_23, %c0_24] : memref<2x128xf32, #tpu.memory_space<vmem>>, vector<2x128xf32>
      tpu.vector_store %arg6[%c0_23, %c0_24], %31 {strides = array<i32>} : memref<2x128xf32, #tpu.memory_space<vmem>>, vector<2x128xf32>,
    } else {
    }
    %c0 = arith.constant 0 : index
    %c0_1 = arith.constant 0 : index
    %3 = vector.load %arg2[%c0, %c0_1] : memref<16x7xbf16, #tpu.memory_space<vmem>>, vector<16x7xbf16>
    %c0_2 = arith.constant 0 : index
    %c0_3 = arith.constant 0 : index
    %4 = vector.load %arg3[%c0_2, %c0_3] : memref<16x128xf32, #tpu.memory_space<vmem>>, vector<16x128xf32>
    %c0_4 = arith.constant 0 : index
    %c0_5 = arith.constant 0 : index
    %c0_6 = arith.constant 0 : index
    %5 = vector.load %arg4[%c0_4, %c0_5, %c0_6] : memref<16x128x128xbf16, #tpu.memory_space<vmem>>, vector<16x128x128xbf16>
    %c0_7 = arith.constant 0 : index
    %c0_8 = arith.constant 0 : index
    %c0_9 = arith.constant 0 : index
    %6 = vector.load %arg1[%c0_7, %c0_8, %c0_9] : memref<2x7x128xf32, #tpu.memory_space<vmem>>, vector<1x7x128xf32>
    %7 = vector.shape_cast %6 : vector<1x7x128xf32> to vector<7x128xf32>
    %8 = arith.truncf %7 : vector<7x128xf32> to vector<7x128xbf16>
    %cst = arith.constant dense<0.000000e+00> : vector<16x128xf32>
    %9 = tpu.matmul %3, %8, %cst {dimension_numbers = #tpu.dot_dimension_numbers<[1], [0], [0], [1], [0, 0, 1, 1], [], []>} : vector<16x7xbf16>, vector<7x128xbf16>, vector<16x128xf32> -> vector<16x128xf32>
    %10 = arith.addf %9, %4 : vector<16x128xf32>
    %cst_10 = arith.constant 0.000000e+00 : f32
    %11 = vector.broadcast %cst_10 : f32 to vector<16x128xf32>
    %12 = arith.maximumf %10, %11 : vector<16x128xf32>
    %c1 = arith.constant 1 : index
    %c0_11 = arith.constant 0 : index
    %c0_12 = arith.constant 0 : index
    %13 = vector.load %arg1[%c1, %c0_11, %c0_12] : memref<2x7x128xf32, #tpu.memory_space<vmem>>, vector<1x7x128xf32>
    %14 = vector.shape_cast %13 : vector<1x7x128xf32> to vector<7x128xf32>
    %15 = arith.truncf %14 : vector<7x128xf32> to vector<7x128xbf16>
    %cst_13 = arith.constant dense<0.000000e+00> : vector<16x128xf32>
    %16 = tpu.matmul %3, %15, %cst_13 {dimension_numbers = #tpu.dot_dimension_numbers<[1], [0], [0], [1], [0, 0, 1, 1], [], []>} : vector<16x7xbf16>, vector<7x128xbf16>, vector<16x128xf32> -> vector<16x128xf32>
    %17 = arith.addf %16, %4 : vector<16x128xf32>
    %cst_14 = arith.constant 0.000000e+00 : f32
    %18 = vector.broadcast %cst_14 : f32 to vector<16x128xf32>
    %19 = arith.maximumf %17, %18 : vector<16x128xf32>
    %20 = vector.shape_cast %12 : vector<16x128xf32> to vector<16x1x128xf32>
    %21 = vector.shape_cast %19 : vector<16x128xf32> to vector<16x1x128xf32>
    %22 = tpu.concatenate %20, %21 in 1 : vector<16x1x128xf32>, vector<16x1x128xf32> -> vector<16x2x128xf32>
    %23 = arith.truncf %22 : vector<16x2x128xf32> to vector<16x2x128xbf16>
    "tpu.trace_start"() <{level = 10 : i32, message = "fbt,fto->fbo"}> : () -> ()
    %cst_15 = arith.constant dense<0.000000e+00> : vector<16x2x128xf32>
    %24 = tpu.matmul %23, %5, %cst_15 {dimension_numbers = #tpu.dot_dimension_numbers<[2], [1], [1], [2], [0, 0, 0, 1, 1, 2], [0], [0]>} : vector<16x2x128xbf16>, vector<16x128x128xbf16>, vector<16x2x128xf32> -> vector<16x2x128xf32>
    "tpu.trace_stop"() : () -> ()
    %c0_16 = arith.constant 0 : index
    %c0_17 = arith.constant 0 : index
    %25 = vector.load %arg6[%c0_16, %c0_17] : memref<2x128xf32, #tpu.memory_space<vmem>>, vector<2x128xf32>
    %cst_18 = arith.constant dense<0.000000e+00> : vector<2x128xf32>
    %26 = vector.multi_reduction <add>, %24, %cst_18 [0] : vector<16x2x128xf32> to vector<2x128xf32>
    %27 = arith.addf %25, %26 : vector<2x128xf32>
    %c0_19 = arith.constant 0 : index
    %c0_20 = arith.constant 0 : index
    %28 = vector.load %arg6[%c0_19, %c0_20] : memref<2x128xf32, #tpu.memory_space<vmem>>, vector<2x128xf32>
    tpu.vector_store %arg6[%c0_19, %c0_20], %27 {strides = array<i32>} : memref<2x128xf32, #tpu.memory_space<vmem>>, vector<2x128xf32>,
    return
  }
  func.func @transform_0(%arg0: i32) -> (i32, i32, i32) {
    %c0_i32 = arith.constant 0 : i32
    %c0_i32_0 = arith.constant 0 : i32
    %c0_i32_1 = arith.constant 0 : i32
    return %c0_i32, %c0_i32_0, %arg0 : i32, i32, i32
  }
  func.func @transform_1(%arg0: i32) -> (i32, i32) {
    %c0_i32 = arith.constant 0 : i32
    %c0_i32_0 = arith.constant 0 : i32
    %c0_i32_1 = arith.constant 0 : i32
    return %c0_i32, %c0_i32_0 : i32, i32
  }
  func.func @transform_2(%arg0: i32) -> (i32, i32) {
    %c0_i32 = arith.constant 0 : i32
    %c0_i32_0 = arith.constant 0 : i32
    %c0_i32_1 = arith.constant 0 : i32
    return %c0_i32, %c0_i32_0 : i32, i32
  }
  func.func @transform_3(%arg0: i32) -> (i32, i32, i32) {
    %c0_i32 = arith.constant 0 : i32
    %c0_i32_0 = arith.constant 0 : i32
    %c0_i32_1 = arith.constant 0 : i32
    return %c0_i32, %arg0, %c0_i32_0 : i32, i32, i32
  }
  func.func @transform_4(%arg0: i32) -> (i32, i32) {
    %c0_i32 = arith.constant 0 : i32
    %c0_i32_0 = arith.constant 0 : i32
    %c0_i32_1 = arith.constant 0 : i32
    return %c0_i32, %c0_i32_0 : i32, i32
  }
  func.func @transform_5(%arg0: i32) -> (i32, i32) {
    %c0_i32 = arith.constant 0 : i32
    %c0_i32_0 = arith.constant 0 : i32
    %c0_i32_1 = arith.constant 0 : i32
    return %c0_i32, %c0_i32_0 : i32, i32
  }
}

</mosaic_0001>

<llo_original>
// kernel: two_parallel_models_forward.1
$region0: #{two_parallel_models_forward.1}
  #allocation0 [shape = 'u32[]', space=smem, size = 0x4, offset = 0x4, fixed_abs, tag = 'smem constant byte address 0x4 - core index']
  #allocation1 [shape = 'u32[144,128]{1,0:T(1,128)}', space=vmem, size = 0x12000, scoped, tag = 'internal scratch']
  #allocation7 [shape = 's32[]', space=sflag, size = 0x4, offset = 0, fixed_abs, tag = 'sflag constant byte address 0x0 - dummy sync flag']
  %s0 = inlined_call_operand.vmem [shape: f32[2,7,256], index: 0, kind: input, shape index: {}]
  %s1 = inlined_call_operand.vmem [shape: bf16[16,7], index: 1, kind: input, shape index: {}]
  %s2 = inlined_call_operand.vmem [shape: f32[16,128], index: 2, kind: input, shape index: {}]
  %s3 = inlined_call_operand.hbm [shape: bf16[16,256,128], index: 3, kind: input, shape index: {}]
  %s4 = inlined_call_operand.vmem [shape: f32[1,128], index: 4, kind: input, shape index: {}]
  %s5 = inlined_call_operand.hbm [shape: f32[2,128], index: 5, kind: output, shape index: {}]
  %s6 = sld [smem:[#allocation0]]
  $region99: #{two_parallel_models_forward.1} parent=0
    _
  %s8 = ssub.s32 1, %s6
  %s9 = scalar_select 0, %s8, %s6
  $region1: #{two_parallel_models_forward.1} parent=0
    #allocation2 [shape = 'u8[16384]{0}', space=vmem, size = 0x4000, scoped, tag = 'input window, operand 0']
    #allocation3 [shape = 'u8[1048576]{0}', space=vmem, size = 0x100000, scoped, tag = 'input window, operand 3']
    #allocation4 [shape = 's32[2]{0}', space=sflag, size = 0x8, scoped, tag = 'scoped memory for two_parallel_models_forward.1']
    #allocation5 [shape = 's32[2]{0}', space=sflag, size = 0x8, scoped, tag = 'scoped memory for two_parallel_models_forward.1']
    #allocation6 [shape = 'u8[1024]{0}', space=vmem, size = 0x400, scoped, tag = 'output window, operand 0, single buffered']
    %10 = vsyncpa [#allocation4], 0
    %s11 = scalar_lea.sflag [#allocation4], 1
    %12 = vsyncpa %s11, 0
    %13 = vsyncpa [#allocation5], 0
    loop: start=0, step=1, limit=4
    $region2: #{two_parallel_models_forward.1} parent=1 // loop_pre_header
      _
    $region3: #{two_parallel_models_forward.1} parent=1 // loop_header
      %s15 = sphi 0, %s19
      %p16 = scmp.ge.s32.totalorder %s15, 4
      %s25 = sphi 0, %s27
      %s28 = sphi 0, %s25
      %s29 = sphi 0, %s28
      %s45 = sphi 0, %s29
      %s49 = sphi 0, %s49
      %s51 = sphi 0, %s49
      %s52 = sphi 0, %s51
      %s66 = sphi 0, %s52
      %s70 = sphi 0, %s70
      %s72 = sphi 0, %s70
      %s73 = sphi 0, %s72
      %s87 = sphi 0, %s73
      %s93 = sphi 0, %s95
      %s96 = sphi 0, %s93
      %s97 = sphi 0, %s96
      %s113 = sphi 0, %s97
      %s117 = sphi 0, %s117
      %s119 = sphi 0, %s117
      %s120 = sphi 0, %s119
      %s134 = sphi 0, %s120
      %s138 = sphi 0, %s138
      %s140 = sphi 0, %s138
      %s141 = sphi 0, %s140
      %s155 = sphi 0, %s141
    $region4: #{two_parallel_models_forward.1} parent=1 // loop_header_branch
      %18 = sbr.rel (%p16) target = $region8
    $region5: #{two_parallel_models_forward.1} parent=1 // loop_body
      %s20 = ssub.s32 %s15, 1
      %s21 = ssub.s32 %s15, 2
      %s22 = sadd.s32 %s15, 1
      %s23 = ssub.s32 %s15, %s22
      %p24 = scmp.eq.s32.totalorder %s23, 0
      %s26 = sadd.s32 %s25, 1
      %s27 = scalar_select %p24, %s25, %s26
      %p30 = pneg %p24
      %p31 = scmp.eq.s32.totalorder %s15, 1
      %p32 = por %p30, %p31
      %p33 = scmp.ne.s32.totalorder %s25, %s28
      %p34 = scmp.eq.s32.totalorder %s15, 0
      %p35 = por %p33, %p34
      %p36 = scmp.ne.s32.totalorder %s25, %s28
      %p37 = scmp.eq.s32.totalorder %s20, 1
      %p38 = por %p36, %p37
      %p39 = scmp.ne.s32.totalorder %s28, %s29
      %p40 = scmp.eq.s32.totalorder %s20, 0
      %p41 = por %p39, %p40
      %p42 = scmp.ne.s32.totalorder %s28, %s29
      %p43 = scmp.eq.s32.totalorder %s21, 1
      %p44 = por %p42, %p43
      %p46 = scmp.ne.s32.totalorder %s29, %s45
      %p47 = scmp.eq.s32.totalorder %s21, 0
      %p48 = por %p46, %p47
      %s50 = sadd.s32 %s49, 1
      %p53 = scmp.eq.s32.totalorder %s15, 1
      %p54 = scmp.ne.s32.totalorder %s49, %s51
      %p55 = scmp.eq.s32.totalorder %s15, 0
      %p56 = por %p54, %p55
      %p57 = scmp.ne.s32.totalorder %s49, %s51
      %p58 = scmp.eq.s32.totalorder %s20, 1
      %p59 = por %p57, %p58
      %p60 = scmp.ne.s32.totalorder %s51, %s52
      %p61 = scmp.eq.s32.totalorder %s20, 0
      %p62 = por %p60, %p61
      %p63 = scmp.ne.s32.totalorder %s51, %s52
      %p64 = scmp.eq.s32.totalorder %s21, 1
      %p65 = por %p63, %p64
      %p67 = scmp.ne.s32.totalorder %s52, %s66
      %p68 = scmp.eq.s32.totalorder %s21, 0
      %p69 = por %p67, %p68
      %s71 = sadd.s32 %s70, 1
      %p74 = scmp.eq.s32.totalorder %s15, 1
      %p75 = scmp.ne.s32.totalorder %s70, %s72
      %p76 = scmp.eq.s32.totalorder %s15, 0
      %p77 = por %p75, %p76
      %p78 = scmp.ne.s32.totalorder %s70, %s72
      %p79 = scmp.eq.s32.totalorder %s20, 1
      %p80 = por %p78, %p79
      %p81 = scmp.ne.s32.totalorder %s72, %s73
      %p82 = scmp.eq.s32.totalorder %s20, 0
      %p83 = por %p81, %p82
      %p84 = scmp.ne.s32.totalorder %s72, %s73
      %p85 = scmp.eq.s32.totalorder %s21, 1
      %p86 = por %p84, %p85
      %p88 = scmp.ne.s32.totalorder %s73, %s87
      %p89 = scmp.eq.s32.totalorder %s21, 0
      %p90 = por %p88, %p89
      %s91 = ssub.s32 %s15, %s22
      %p92 = scmp.eq.s32.totalorder %s91, 0
      %s94 = sadd.s32 %s93, 1
      %s95 = scalar_select %p92, %s93, %s94
      %p98 = pneg %p92
      %p99 = scmp.eq.s32.totalorder %s15, 1
      %p100 = por %p98, %p99
      %p101 = scmp.ne.s32.totalorder %s93, %s96
      %p102 = scmp.eq.s32.totalorder %s15, 0
      %p103 = por %p101, %p102
      %p104 = scmp.ne.s32.totalorder %s93, %s96
      %p105 = scmp.eq.s32.totalorder %s20, 1
      %p106 = por %p104, %p105
      %p107 = scmp.ne.s32.totalorder %s96, %s97
      %p108 = scmp.eq.s32.totalorder %s20, 0
      %p109 = por %p107, %p108
      %p110 = scmp.ne.s32.totalorder %s96, %s97
      %p111 = scmp.eq.s32.totalorder %s21, 1
      %p112 = por %p110, %p111
      %p114 = scmp.ne.s32.totalorder %s97, %s113
      %p115 = scmp.eq.s32.totalorder %s21, 0
      %p116 = por %p114, %p115
      %s118 = sadd.s32 %s117, 1
      %p121 = scmp.eq.s32.totalorder %s15, 1
      %p122 = scmp.ne.s32.totalorder %s117, %s119
      %p123 = scmp.eq.s32.totalorder %s15, 0
      %p124 = por %p122, %p123
      %p125 = scmp.ne.s32.totalorder %s117, %s119
      %p126 = scmp.eq.s32.totalorder %s20, 1
      %p127 = por %p125, %p126
      %p128 = scmp.ne.s32.totalorder %s119, %s120
      %p129 = scmp.eq.s32.totalorder %s20, 0
      %p130 = por %p128, %p129
      %p131 = scmp.ne.s32.totalorder %s119, %s120
      %p132 = scmp.eq.s32.totalorder %s21, 1
      %p133 = por %p131, %p132
      %p135 = scmp.ne.s32.totalorder %s120, %s134
      %p136 = scmp.eq.s32.totalorder %s21, 0
      %p137 = por %p135, %p136
      %s139 = sadd.s32 %s138, 1
      %p142 = scmp.eq.s32.totalorder %s15, 1
      %p143 = scmp.ne.s32.totalorder %s138, %s140
      %p144 = scmp.eq.s32.totalorder %s15, 0
      %p145 = por %p143, %p144
      %p146 = scmp.ne.s32.totalorder %s138, %s140
      %p147 = scmp.eq.s32.totalorder %s20, 1
      %p148 = por %p146, %p147
      %p149 = scmp.ne.s32.totalorder %s140, %s141
      %p150 = scmp.eq.s32.totalorder %s20, 0
      %p151 = por %p149, %p150
      %p152 = scmp.ne.s32.totalorder %s140, %s141
      %p153 = scmp.eq.s32.totalorder %s21, 1
      %p154 = por %p152, %p153
      %p156 = scmp.ne.s32.totalorder %s141, %s155
      %p157 = scmp.eq.s32.totalorder %s21, 0
      %p158 = por %p156, %p157
      %p159 = scmp.le.s32.totalorder 1, %s15
      %p160 = scmp.lt.s32.totalorder %s15, 3
      %p161 = pnand %p159, %p160
      %p162 = pneg %p161
      // Predicated region
      $region9: #{two_parallel_models_forward.1} parent=5 // pred_check
        _
      $region10: #{two_parallel_models_forward.1} parent=5 // pred_check_branch
        %164 = sbr.rel (%p161) target = $region12
      $region11: #{two_parallel_models_forward.1} parent=5 // pred_region
        %s165 = ssub.s32 %s15, 1
        // Predicated region
        $region13: #{two_parallel_models_forward.1} parent=11 // pred_check
          %p166 = pneg %p62
        $region14: #{two_parallel_models_forward.1} parent=11 // pred_check_branch
          %168 = sbr.rel (%p166) target = $region16
        $region15: #{two_parallel_models_forward.1} parent=11 // pred_region
          _
        $region16: #{two_parallel_models_forward.1} parent=11 // pred_fallthru
          _
        // Predicated region
        $region17: #{two_parallel_models_forward.1} parent=11 // pred_check
          %p169 = pneg %p83
        $region18: #{two_parallel_models_forward.1} parent=11 // pred_check_branch
          %171 = sbr.rel (%p169) target = $region20
        $region19: #{two_parallel_models_forward.1} parent=11 // pred_region
          _
        $region20: #{two_parallel_models_forward.1} parent=11 // pred_fallthru
          _
        // Predicated region
        $region21: #{two_parallel_models_forward.1} parent=11 // pred_check
          %p172 = pneg %p130
        $region22: #{two_parallel_models_forward.1} parent=11 // pred_check_branch
          %174 = sbr.rel (%p172) target = $region24
        $region23: #{two_parallel_models_forward.1} parent=11 // pred_region
          _
        $region24: #{two_parallel_models_forward.1} parent=11 // pred_fallthru
          _
      $region12: #{two_parallel_models_forward.1} parent=5 // pred_fallthru
        _
      %p175 = scmp.lt.s32.totalorder %s15, 2
      // Predicated region
      $region25: #{two_parallel_models_forward.1} parent=5 // pred_check
        %p176 = pneg %p175
      $region26: #{two_parallel_models_forward.1} parent=5 // pred_check_branch
        %178 = sbr.rel (%p176) target = $region28
      $region27: #{two_parallel_models_forward.1} parent=5 // pred_region
        // Predicated region
        $region29: #{two_parallel_models_forward.1} parent=27 // pred_check
          %p179 = pneg %p35
        $region30: #{two_parallel_models_forward.1} parent=27 // pred_check_branch
          %181 = sbr.rel (%p179) target = $region32
        $region31: #{two_parallel_models_forward.1} parent=27 // pred_region
          %s182 = sand.u32 %s25, 1
          %s183 = sand.u32 %s25, 1
          %s184 = smul.addr %s183, 16
          %s185 = scalar_lea.vmem [#allocation2], %s184
          %s186 = smul.addr %s15, 8
          %s187 = scalar_lea.vmem %s0, %s186
          // Predicated region
          $region33: #{two_parallel_models_forward.1} parent=31 // pred_check
            _
          $region34: #{two_parallel_models_forward.1} parent=31 // pred_check_branch
            %189 = sbr.rel (0) target = $region36
          $region35: #{two_parallel_models_forward.1} parent=31 // pred_region
            // Predicated region
            $region37: #{two_parallel_models_forward.1} parent=35 // pred_check
              _
            $region38: #{two_parallel_models_forward.1} parent=35 // pred_check_branch
              %191 = sbr.rel (0) target = $region40
            $region39: #{two_parallel_models_forward.1} parent=35 // pred_region
              // Predicated region
              $region52: #{two_parallel_models_forward.1} parent=39 // pred_check
                _
              $region53: #{two_parallel_models_forward.1} parent=39 // pred_check_branch
                %209 = sbr.rel (0) target = $region55
              $region54: #{two_parallel_models_forward.1} parent=39 // pred_region
                loop: start=0, step=1, limit=1
                $region56: #{two_parallel_models_forward.1} parent=54 // loop_pre_header
                  _
                $region57: #{two_parallel_models_forward.1} parent=54 // loop_header
                  %s211 = sphi 0, %s215
                  %p212 = scmp.ge.s32.totalorder %s211, 1
                  %s216 = sphi %s187, %s187
                  %s217 = sphi %s185, %s185
                $region58: #{two_parallel_models_forward.1} parent=54 // loop_header_branch
                  %214 = sbr.rel (%p212) target = $region62
                $region59: #{two_parallel_models_forward.1} parent=54 // loop_body
                  %v218 = vld [vmem:[%s216] sm:$0xff]
                  %219 = vst [vmem:[%s217] sm:$0xff] %v218
                  %v220 = vld [vmem:[%s216 + $0x10] sm:$0xff]
                  %221 = vst [vmem:[%s217 + $0x8] sm:$0xff] %v220
                $region60: #{two_parallel_models_forward.1} parent=54 // loop_footer
                  %s215 = sadd.s32 1, %s211
                $region61: #{two_parallel_models_forward.1} parent=54 // loop_footer_branch
                  %210 = sbr.rel target = $region57
                $region62: #{two_parallel_models_forward.1} parent=54 // loop_exit
                  _
              $region55: #{two_parallel_models_forward.1} parent=39 // pred_fallthru
                _
              // Predicated region
              $region63: #{two_parallel_models_forward.1} parent=39 // pred_check
                _
              $region64: #{two_parallel_models_forward.1} parent=39 // pred_check_branch
                %223 = sbr.rel target = $region66
              $region65: #{two_parallel_models_forward.1} parent=39 // pred_region
                _
              $region66: #{two_parallel_models_forward.1} parent=39 // pred_fallthru
                _
            $region40: #{two_parallel_models_forward.1} parent=35 // pred_fallthru
              _
            // Predicated region
            $region41: #{two_parallel_models_forward.1} parent=35 // pred_check
              _
            $region42: #{two_parallel_models_forward.1} parent=35 // pred_check_branch
              %193 = sbr.rel target = $region44
            $region43: #{two_parallel_models_forward.1} parent=35 // pred_region
              %s195 = ssub.s32 256, 1
              loop: start=0, step=1, limit=1
              $region45: #{two_parallel_models_forward.1} parent=43 // loop_pre_header
                _
              $region46: #{two_parallel_models_forward.1} parent=43 // loop_header
                %s197 = sphi 0, %s201
                %p198 = scmp.ge.s32.totalorder %s197, 1
                %s202 = sphi %s187, %s187
                %s203 = sphi %s185, %s185
              $region47: #{two_parallel_models_forward.1} parent=43 // loop_header_branch
                %200 = sbr.rel (%p198) target = $region51
              $region48: #{two_parallel_models_forward.1} parent=43 // loop_body
                %v204 = vld [vmem:[%s202] sm:%s195]
                %205 = vst [vmem:[%s203] sm:%s195] %v204
                %v206 = vld [vmem:[%s202 + $0x10] sm:%s195]
                %207 = vst [vmem:[%s203 + $0x8] sm:%s195] %v206
              $region49: #{two_parallel_models_forward.1} parent=43 // loop_footer
                %s201 = sadd.s32 1, %s197
              $region50: #{two_parallel_models_forward.1} parent=43 // loop_footer_branch
                %196 = sbr.rel target = $region46
              $region51: #{two_parallel_models_forward.1} parent=43 // loop_exit
                _
            $region44: #{two_parallel_models_forward.1} parent=35 // pred_fallthru
              _
          $region36: #{two_parallel_models_forward.1} parent=31 // pred_fallthru
            _
          %224 = vnop
        $region32: #{two_parallel_models_forward.1} parent=27 // pred_fallthru
          _
        // Predicated region
        $region67: #{two_parallel_models_forward.1} parent=27 // pred_check
          %p225 = pneg %p103
        $region68: #{two_parallel_models_forward.1} parent=27 // pred_check_branch
          %227 = sbr.rel (%p225) target = $region70
        $region69: #{two_parallel_models_forward.1} parent=27 // pred_region
          #allocation8 [shape = 'u32[6]{0}', space=smem, size = 0x18, scoped, tag = 'DMA stride descriptor']
          %s228 = sand.u32 %s93, 1
          %s229 = scalar_lea.sflag [#allocation4], %s228
          %s230 = sand.u32 %s93, 1
          %s231 = smul.addr %s230, 1024
          %s232 = scalar_lea.vmem [#allocation3], %s231
          %s233 = smul.u32 16, %s15
          %s235 = ssub.s32 16384, 16384
          %236 = vsyncadd %s229, %s235
          %s237 = smul.addr %s233, 64
          %s238 = scalar_lea.hbm %s3, %s237
          %s240 = sshll.u32 1, 14
          %s241 = sxor.u32 4294967295, %s240
          %s243 = sld [smem:[#allocation0]]
          %s244 = sadd.s32 2, %s243
          %s246 = sshll.u32 7, 26
          %s247 = sxor.u32 4294967295, %s246
          %s248 = sand.u32 0, %s247
          %s249 = sshll.u32 %s244, 26
          %s250 = sor.u32 %s248, %s249
          %s251 = sshll.u32 %s232, 4
          %s252 = int_to_ptr.vmem [resolvable:$true] %s251
          %258 = sst [smem:[#allocation8]] 2048
          %s259 = scalar_lea.smem [#allocation8], 1
          %260 = sst [smem:[%s259]] 1024
          %s261 = scalar_lea.smem [#allocation8], 2
          %262 = sst [smem:[%s261]] 16
          %s263 = scalar_lea.smem [#allocation8], 3
          %264 = sst [smem:[%s263]] 64
          %s265 = scalar_lea.smem [#allocation8], 4
          %266 = sst [smem:[%s265]] 64
          %s267 = scalar_lea.smem [#allocation8], 5
          %268 = sst [smem:[%s267]] 4
          %270 = dma.general %s238, 16384, %s252, %s229, 131072, [#allocation8], %s250, 0
        $region70: #{two_parallel_models_forward.1} parent=27 // pred_fallthru
          _
      $region28: #{two_parallel_models_forward.1} parent=5 // pred_fallthru
        _
      %p271 = scmp.le.s32.totalorder 1, %s15
      %p272 = scmp.lt.s32.totalorder %s15, 3
      %p273 = pnand %p271, %p272
      %p274 = pneg %p273
      // Predicated region
      $region71: #{two_parallel_models_forward.1} parent=5 // pred_check
        _
      $region72: #{two_parallel_models_forward.1} parent=5 // pred_check_branch
        %276 = sbr.rel (%p273) target = $region74
      $region73: #{two_parallel_models_forward.1} parent=5 // pred_region
        %s277 = ssub.s32 %s15, 1
        %s278 = sand.u32 %s28, 1
        %s279 = sand.u32 %s28, 1
        %s280 = smul.addr %s279, 16
        %s281 = scalar_lea.vmem [#allocation2], %s280
        // Predicated region
        $region75: #{two_parallel_models_forward.1} parent=73 // pred_check
          %p282 = pneg %p41
        $region76: #{two_parallel_models_forward.1} parent=73 // pred_check_branch
          %284 = sbr.rel (%p282) target = $region78
        $region77: #{two_parallel_models_forward.1} parent=73 // pred_region
          _
        $region78: #{two_parallel_models_forward.1} parent=73 // pred_fallthru
          _
        %s285 = sand.u32 %s96, 1
        %s286 = scalar_lea.sflag [#allocation4], %s285
        %s287 = sand.u32 %s96, 1
        %s288 = smul.addr %s287, 1024
        %s289 = scalar_lea.vmem [#allocation3], %s288
        // Predicated region
        $region79: #{two_parallel_models_forward.1} parent=73 // pred_check
          %p290 = pneg %p109
        $region80: #{two_parallel_models_forward.1} parent=73 // pred_check_branch
          %292 = sbr.rel (%p290) target = $region82
        $region81: #{two_parallel_models_forward.1} parent=73 // pred_region
          %293 = dma.done %s286, 16384
        $region82: #{two_parallel_models_forward.1} parent=73 // pred_fallthru
          _
        %s294 = sand.u32 %s28, 1
        %s295 = sand.u32 %s28, 1
        %s296 = smul.addr %s295, 16
        %s297 = scalar_lea.vmem [#allocation2], %s296
        %p298 = pneg %p41
        %p299 = pneg %p38
        %p300 = pneg %p62
        %p301 = pneg %p59
        %p302 = pneg %p83
        %p303 = pneg %p80
        %s304 = sand.u32 %s96, 1
        %s305 = scalar_lea.sflag [#allocation4], %s304
        %s306 = sand.u32 %s96, 1
        %s307 = smul.addr %s306, 1024
        %s308 = scalar_lea.vmem [#allocation3], %s307
        %p309 = pneg %p109
        %p310 = pneg %p106
        %p311 = pneg %p130
        %p312 = pneg %p127
        %p313 = pneg %p151
        %p314 = pneg %p148
        %s315 = smul.u32 16, %s20
        %p317 = scmp.eq.s32.totalorder %s20, 0
        // Predicated region
        $region83: #{two_parallel_models_forward.1} parent=73 // pred_check
          %p318 = pneg %p317
        $region84: #{two_parallel_models_forward.1} parent=73 // pred_check_branch
          %320 = sbr.rel (%p318) target = $region86
        $region85: #{two_parallel_models_forward.1} parent=73 // pred_region
          %v321 = vld [vmem:[%s4] sm:$0x1]
          %v323 = vlaneseq
          %v324 = vshrl.u32 %v323, 7
          %v325 = vsub.s32 0, %v324
          %v326 = vrot.slane %v321, %v325
          %328 = vst [vmem:[#allocation6] sm:$0x3] %v326
        $region86: #{two_parallel_models_forward.1} parent=73 // pred_fallthru
          _
        %v329 = vld [vmem:[%s1] sm:$0xf]
        %v330 = vld [vmem:[%s1 + $0x4] sm:$0xf]
        %v331 = vld [vmem:[%s2] sm:$0xff]
        %v332 = vld [vmem:[%s2 + $0x8] sm:$0xff]
        %v333 = vld [vmem:[%s289] sm:$0xf]
        %v334 = vld [vmem:[%s289 + $0x4] sm:$0xf]
        %v335 = vld [vmem:[%s289 + $0x8] sm:$0xf]
        %v336 = vld [vmem:[%s289 + $0xc] sm:$0xf]
        %v337 = vld [vmem:[%s289 + $0x10] sm:$0xf]
        %v338 = vld [vmem:[%s289 + $0x14] sm:$0xf]
        %v339 = vld [vmem:[%s289 + $0x18] sm:$0xf]
        %v340 = vld [vmem:[%s289 + $0x1c] sm:$0xf]
        %v341 = vld [vmem:[%s289 + $0x20] sm:$0xf]
        %v342 = vld [vmem:[%s289 + $0x24] sm:$0xf]
        %v343 = vld [vmem:[%s289 + $0x28] sm:$0xf]
        %v344 = vld [vmem:[%s289 + $0x2c] sm:$0xf]
        %v345 = vld [vmem:[%s289 + $0x30] sm:$0xf]
        %v346 = vld [vmem:[%s289 + $0x34] sm:$0xf]
        %v347 = vld [vmem:[%s289 + $0x38] sm:$0xf]
        %v348 = vld [vmem:[%s289 + $0x3c] sm:$0xf]
        %v349 = vld [vmem:[%s289 + $0x40] sm:$0xf]
        %v350 = vld [vmem:[%s289 + $0x44] sm:$0xf]
        %v351 = vld [vmem:[%s289 + $0x48] sm:$0xf]
        %v352 = vld [vmem:[%s289 + $0x4c] sm:$0xf]
        %v353 = vld [vmem:[%s289 + $0x50] sm:$0xf]
        %v354 = vld [vmem:[%s289 + $0x54] sm:$0xf]
        %v355 = vld [vmem:[%s289 + $0x58] sm:$0xf]
        %v356 = vld [vmem:[%s289 + $0x5c] sm:$0xf]
        %v357 = vld [vmem:[%s289 + $0x60] sm:$0xf]
        %v358 = vld [vmem:[%s289 + $0x64] sm:$0xf]
        %v359 = vld [vmem:[%s289 + $0x68] sm:$0xf]
        %v360 = vld [vmem:[%s289 + $0x6c] sm:$0xf]
        %v361 = vld [vmem:[%s289 + $0x70] sm:$0xf]
        %v362 = vld [vmem:[%s289 + $0x74] sm:$0xf]
        %v363 = vld [vmem:[%s289 + $0x78] sm:$0xf]
        %v364 = vld [vmem:[%s289 + $0x7c] sm:$0xf]
        %v365 = vld [vmem:[%s289 + $0x80] sm:$0xf]
        %v366 = vld [vmem:[%s289 + $0x84] sm:$0xf]
        %v367 = vld [vmem:[%s289 + $0x88] sm:$0xf]
        %v368 = vld [vmem:[%s289 + $0x8c] sm:$0xf]
        %v369 = vld [vmem:[%s289 + $0x90] sm:$0xf]
        %v370 = vld [vmem:[%s289 + $0x94] sm:$0xf]
        %v371 = vld [vmem:[%s289 + $0x98] sm:$0xf]
        %v372 = vld [vmem:[%s289 + $0x9c] sm:$0xf]
        %v373 = vld [vmem:[%s289 + $0xa0] sm:$0xf]
        %v374 = vld [vmem:[%s289 + $0xa4] sm:$0xf]
        %v375 = vld [vmem:[%s289 + $0xa8] sm:$0xf]
        %v376 = vld [vmem:[%s289 + $0xac] sm:$0xf]
        %v377 = vld [vmem:[%s289 + $0xb0] sm:$0xf]
        %v378 = vld [vmem:[%s289 + $0xb4] sm:$0xf]
        %v379 = vld [vmem:[%s289 + $0xb8] sm:$0xf]
        %v380 = vld [vmem:[%s289 + $0xbc] sm:$0xf]
        %v381 = vld [vmem:[%s289 + $0xc0] sm:$0xf]
        %v382 = vld [vmem:[%s289 + $0xc4] sm:$0xf]
        %v383 = vld [vmem:[%s289 + $0xc8] sm:$0xf]
        %v384 = vld [vmem:[%s289 + $0xcc] sm:$0xf]
        %v385 = vld [vmem:[%s289 + $0xd0] sm:$0xf]
        %v386 = vld [vmem:[%s289 + $0xd4] sm:$0xf]
        %v387 = vld [vmem:[%s289 + $0xd8] sm:$0xf]
        %v388 = vld [vmem:[%s289 + $0xdc] sm:$0xf]
        %v389 = vld [vmem:[%s289 + $0xe0] sm:$0xf]
        %v390 = vld [vmem:[%s289 + $0xe4] sm:$0xf]
        %v391 = vld [vmem:[%s289 + $0xe8] sm:$0xf]
        %v392 = vld [vmem:[%s289 + $0xec] sm:$0xf]
        %v393 = vld [vmem:[%s289 + $0xf0] sm:$0xf]
        %v394 = vld [vmem:[%s289 + $0xf4] sm:$0xf]
        %v395 = vld [vmem:[%s289 + $0xf8] sm:$0xf]
        %v396 = vld [vmem:[%s289 + $0xfc] sm:$0xf]
        %v397 = vld [vmem:[%s289 + $0x100] sm:$0xf]
        %v398 = vld [vmem:[%s289 + $0x104] sm:$0xf]
        %v399 = vld [vmem:[%s289 + $0x108] sm:$0xf]
        %v400 = vld [vmem:[%s289 + $0x10c] sm:$0xf]
        %v401 = vld [vmem:[%s289 + $0x110] sm:$0xf]
        %v402 = vld [vmem:[%s289 + $0x114] sm:$0xf]
        %v403 = vld [vmem:[%s289 + $0x118] sm:$0xf]
        %v404 = vld [vmem:[%s289 + $0x11c] sm:$0xf]
        %v405 = vld [vmem:[%s289 + $0x120] sm:$0xf]
        %v406 = vld [vmem:[%s289 + $0x124] sm:$0xf]
        %v407 = vld [vmem:[%s289 + $0x128] sm:$0xf]
        %v408 = vld [vmem:[%s289 + $0x12c] sm:$0xf]
        %v409 = vld [vmem:[%s289 + $0x130] sm:$0xf]
        %v410 = vld [vmem:[%s289 + $0x134] sm:$0xf]
        %v411 = vld [vmem:[%s289 + $0x138] sm:$0xf]
        %v412 = vld [vmem:[%s289 + $0x13c] sm:$0xf]
        %v413 = vld [vmem:[%s289 + $0x140] sm:$0xf]
        %v414 = vld [vmem:[%s289 + $0x144] sm:$0xf]
        %v415 = vld [vmem:[%s289 + $0x148] sm:$0xf]
        %v416 = vld [vmem:[%s289 + $0x14c] sm:$0xf]
        %v417 = vld [vmem:[%s289 + $0x150] sm:$0xf]
        %v418 = vld [vmem:[%s289 + $0x154] sm:$0xf]
        %v419 = vld [vmem:[%s289 + $0x158] sm:$0xf]
        %v420 = vld [vmem:[%s289 + $0x15c] sm:$0xf]
        %v421 = vld [vmem:[%s289 + $0x160] sm:$0xf]
        %v422 = vld [vmem:[%s289 + $0x164] sm:$0xf]
        %v423 = vld [vmem:[%s289 + $0x168] sm:$0xf]
        %v424 = vld [vmem:[%s289 + $0x16c] sm:$0xf]
        %v425 = vld [vmem:[%s289 + $0x170] sm:$0xf]
        %v426 = vld [vmem:[%s289 + $0x174] sm:$0xf]
        %v427 = vld [vmem:[%s289 + $0x178] sm:$0xf]
        %v428 = vld [vmem:[%s289 + $0x17c] sm:$0xf]
        %v429 = vld [vmem:[%s289 + $0x180] sm:$0xf]
        %v430 = vld [vmem:[%s289 + $0x184] sm:$0xf]
        %v431 = vld [vmem:[%s289 + $0x188] sm:$0xf]
        %v432 = vld [vmem:[%s289 + $0x18c] sm:$0xf]
        %v433 = vld [vmem:[%s289 + $0x190] sm:$0xf]
        %v434 = vld [vmem:[%s289 + $0x194] sm:$0xf]
        %v435 = vld [vmem:[%s289 + $0x198] sm:$0xf]
        %v436 = vld [vmem:[%s289 + $0x19c] sm:$0xf]
        %v437 = vld [vmem:[%s289 + $0x1a0] sm:$0xf]
        %v438 = vld [vmem:[%s289 + $0x1a4] sm:$0xf]
        %v439 = vld [vmem:[%s289 + $0x1a8] sm:$0xf]
        %v440 = vld [vmem:[%s289 + $0x1ac] sm:$0xf]
        %v441 = vld [vmem:[%s289 + $0x1b0] sm:$0xf]
        %v442 = vld [vmem:[%s289 + $0x1b4] sm:$0xf]
        %v443 = vld [vmem:[%s289 + $0x1b8] sm:$0xf]
        %v444 = vld [vmem:[%s289 + $0x1bc] sm:$0xf]
        %v445 = vld [vmem:[%s289 + $0x1c0] sm:$0xf]
        %v446 = vld [vmem:[%s289 + $0x1c4] sm:$0xf]
        %v447 = vld [vmem:[%s289 + $0x1c8] sm:$0xf]
        %v448 = vld [vmem:[%s289 + $0x1cc] sm:$0xf]
        %v449 = vld [vmem:[%s289 + $0x1d0] sm:$0xf]
        %v450 = vld [vmem:[%s289 + $0x1d4] sm:$0xf]
        %v451 = vld [vmem:[%s289 + $0x1d8] sm:$0xf]
        %v452 = vld [vmem:[%s289 + $0x1dc] sm:$0xf]
        %v453 = vld [vmem:[%s289 + $0x1e0] sm:$0xf]
        %v454 = vld [vmem:[%s289 + $0x1e4] sm:$0xf]
        %v455 = vld [vmem:[%s289 + $0x1e8] sm:$0xf]
        %v456 = vld [vmem:[%s289 + $0x1ec] sm:$0xf]
        %v457 = vld [vmem:[%s289 + $0x1f0] sm:$0xf]
        %v458 = vld [vmem:[%s289 + $0x1f4] sm:$0xf]
        %v459 = vld [vmem:[%s289 + $0x1f8] sm:$0xf]
        %v460 = vld [vmem:[%s289 + $0x1fc] sm:$0xf]
        %v461 = vld [vmem:[%s289 + $0x200] sm:$0xf]
        %v462 = vld [vmem:[%s289 + $0x204] sm:$0xf]
        %v463 = vld [vmem:[%s289 + $0x208] sm:$0xf]
        %v464 = vld [vmem:[%s289 + $0x20c] sm:$0xf]
        %v465 = vld [vmem:[%s289 + $0x210] sm:$0xf]
        %v466 = vld [vmem:[%s289 + $0x214] sm:$0xf]
        %v467 = vld [vmem:[%s289 + $0x218] sm:$0xf]
        %v468 = vld [vmem:[%s289 + $0x21c] sm:$0xf]
        %v469 = vld [vmem:[%s289 + $0x220] sm:$0xf]
        %v470 = vld [vmem:[%s289 + $0x224] sm:$0xf]
        %v471 = vld [vmem:[%s289 + $0x228] sm:$0xf]
        %v472 = vld [vmem:[%s289 + $0x22c] sm:$0xf]
        %v473 = vld [vmem:[%s289 + $0x230] sm:$0xf]
        %v474 = vld [vmem:[%s289 + $0x234] sm:$0xf]
        %v475 = vld [vmem:[%s289 + $0x238] sm:$0xf]
        %v476 = vld [vmem:[%s289 + $0x23c] sm:$0xf]
        %v477 = vld [vmem:[%s289 + $0x240] sm:$0xf]
        %v478 = vld [vmem:[%s289 + $0x244] sm:$0xf]
        %v479 = vld [vmem:[%s289 + $0x248] sm:$0xf]
        %v480 = vld [vmem:[%s289 + $0x24c] sm:$0xf]
        %v481 = vld [vmem:[%s289 + $0x250] sm:$0xf]
        %v482 = vld [vmem:[%s289 + $0x254] sm:$0xf]
        %v483 = vld [vmem:[%s289 + $0x258] sm:$0xf]
        %v484 = vld [vmem:[%s289 + $0x25c] sm:$0xf]
        %v485 = vld [vmem:[%s289 + $0x260] sm:$0xf]
        %v486 = vld [vmem:[%s289 + $0x264] sm:$0xf]
        %v487 = vld [vmem:[%s289 + $0x268] sm:$0xf]
        %v488 = vld [vmem:[%s289 + $0x26c] sm:$0xf]
        %v489 = vld [vmem:[%s289 + $0x270] sm:$0xf]
        %v490 = vld [vmem:[%s289 + $0x274] sm:$0xf]
        %v491 = vld [vmem:[%s289 + $0x278] sm:$0xf]
        %v492 = vld [vmem:[%s289 + $0x27c] sm:$0xf]
        %v493 = vld [vmem:[%s289 + $0x280] sm:$0xf]
        %v494 = vld [vmem:[%s289 + $0x284] sm:$0xf]
        %v495 = vld [vmem:[%s289 + $0x288] sm:$0xf]
        %v496 = vld [vmem:[%s289 + $0x28c] sm:$0xf]
        %v497 = vld [vmem:[%s289 + $0x290] sm:$0xf]
        %v498 = vld [vmem:[%s289 + $0x294] sm:$0xf]
        %v499 = vld [vmem:[%s289 + $0x298] sm:$0xf]
        %v500 = vld [vmem:[%s289 + $0x29c] sm:$0xf]
        %v501 = vld [vmem:[%s289 + $0x2a0] sm:$0xf]
        %v502 = vld [vmem:[%s289 + $0x2a4] sm:$0xf]
        %v503 = vld [vmem:[%s289 + $0x2a8] sm:$0xf]
        %v504 = vld [vmem:[%s289 + $0x2ac] sm:$0xf]
        %v505 = vld [vmem:[%s289 + $0x2b0] sm:$0xf]
        %v506 = vld [vmem:[%s289 + $0x2b4] sm:$0xf]
        %v507 = vld [vmem:[%s289 + $0x2b8] sm:$0xf]
        %v508 = vld [vmem:[%s289 + $0x2bc] sm:$0xf]
        %v509 = vld [vmem:[%s289 + $0x2c0] sm:$0xf]
        %v510 = vld [vmem:[%s289 + $0x2c4] sm:$0xf]
        %v511 = vld [vmem:[%s289 + $0x2c8] sm:$0xf]
        %v512 = vld [vmem:[%s289 + $0x2cc] sm:$0xf]
        %v513 = vld [vmem:[%s289 + $0x2d0] sm:$0xf]
        %v514 = vld [vmem:[%s289 + $0x2d4] sm:$0xf]
        %v515 = vld [vmem:[%s289 + $0x2d8] sm:$0xf]
        %v516 = vld [vmem:[%s289 + $0x2dc] sm:$0xf]
        %v517 = vld [vmem:[%s289 + $0x2e0] sm:$0xf]
        %v518 = vld [vmem:[%s289 + $0x2e4] sm:$0xf]
        %v519 = vld [vmem:[%s289 + $0x2e8] sm:$0xf]
        %v520 = vld [vmem:[%s289 + $0x2ec] sm:$0xf]
        %v521 = vld [vmem:[%s289 + $0x2f0] sm:$0xf]
        %v522 = vld [vmem:[%s289 + $0x2f4] sm:$0xf]
        %v523 = vld [vmem:[%s289 + $0x2f8] sm:$0xf]
        %v524 = vld [vmem:[%s289 + $0x2fc] sm:$0xf]
        %v525 = vld [vmem:[%s289 + $0x300] sm:$0xf]
        %v526 = vld [vmem:[%s289 + $0x304] sm:$0xf]
        %v527 = vld [vmem:[%s289 + $0x308] sm:$0xf]
        %v528 = vld [vmem:[%s289 + $0x30c] sm:$0xf]
        %v529 = vld [vmem:[%s289 + $0x310] sm:$0xf]
        %v530 = vld [vmem:[%s289 + $0x314] sm:$0xf]
        %v531 = vld [vmem:[%s289 + $0x318] sm:$0xf]
        %v532 = vld [vmem:[%s289 + $0x31c] sm:$0xf]
        %v533 = vld [vmem:[%s289 + $0x320] sm:$0xf]
        %v534 = vld [vmem:[%s289 + $0x324] sm:$0xf]
        %v535 = vld [vmem:[%s289 + $0x328] sm:$0xf]
        %v536 = vld [vmem:[%s289 + $0x32c] sm:$0xf]
        %v537 = vld [vmem:[%s289 + $0x330] sm:$0xf]
        %v538 = vld [vmem:[%s289 + $0x334] sm:$0xf]
        %v539 = vld [vmem:[%s289 + $0x338] sm:$0xf]
        %v540 = vld [vmem:[%s289 + $0x33c] sm:$0xf]
        %v541 = vld [vmem:[%s289 + $0x340] sm:$0xf]
        %v542 = vld [vmem:[%s289 + $0x344] sm:$0xf]
        %v543 = vld [vmem:[%s289 + $0x348] sm:$0xf]
        %v544 = vld [vmem:[%s289 + $0x34c] sm:$0xf]
        %v545 = vld [vmem:[%s289 + $0x350] sm:$0xf]
        %v546 = vld [vmem:[%s289 + $0x354] sm:$0xf]
        %v547 = vld [vmem:[%s289 + $0x358] sm:$0xf]
        %v548 = vld [vmem:[%s289 + $0x35c] sm:$0xf]
        %v549 = vld [vmem:[%s289 + $0x360] sm:$0xf]
        %v550 = vld [vmem:[%s289 + $0x364] sm:$0xf]
        %v551 = vld [vmem:[%s289 + $0x368] sm:$0xf]
        %v552 = vld [vmem:[%s289 + $0x36c] sm:$0xf]
        %v553 = vld [vmem:[%s289 + $0x370] sm:$0xf]
        %v554 = vld [vmem:[%s289 + $0x374] sm:$0xf]
        %v555 = vld [vmem:[%s289 + $0x378] sm:$0xf]
        %v556 = vld [vmem:[%s289 + $0x37c] sm:$0xf]
        %v557 = vld [vmem:[%s289 + $0x380] sm:$0xf]
        %v558 = vld [vmem:[%s289 + $0x384] sm:$0xf]
        %v559 = vld [vmem:[%s289 + $0x388] sm:$0xf]
        %v560 = vld [vmem:[%s289 + $0x38c] sm:$0xf]
        %v561 = vld [vmem:[%s289 + $0x390] sm:$0xf]
        %v562 = vld [vmem:[%s289 + $0x394] sm:$0xf]
        %v563 = vld [vmem:[%s289 + $0x398] sm:$0xf]
        %v564 = vld [vmem:[%s289 + $0x39c] sm:$0xf]
        %v565 = vld [vmem:[%s289 + $0x3a0] sm:$0xf]
        %v566 = vld [vmem:[%s289 + $0x3a4] sm:$0xf]
        %v567 = vld [vmem:[%s289 + $0x3a8] sm:$0xf]
        %v568 = vld [vmem:[%s289 + $0x3ac] sm:$0xf]
        %v569 = vld [vmem:[%s289 + $0x3b0] sm:$0xf]
        %v570 = vld [vmem:[%s289 + $0x3b4] sm:$0xf]
        %v571 = vld [vmem:[%s289 + $0x3b8] sm:$0xf]
        %v572 = vld [vmem:[%s289 + $0x3bc] sm:$0xf]
        %v573 = vld [vmem:[%s289 + $0x3c0] sm:$0xf]
        %v574 = vld [vmem:[%s289 + $0x3c4] sm:$0xf]
        %v575 = vld [vmem:[%s289 + $0x3c8] sm:$0xf]
        %v576 = vld [vmem:[%s289 + $0x3cc] sm:$0xf]
        %v577 = vld [vmem:[%s289 + $0x3d0] sm:$0xf]
        %v578 = vld [vmem:[%s289 + $0x3d4] sm:$0xf]
        %v579 = vld [vmem:[%s289 + $0x3d8] sm:$0xf]
        %v580 = vld [vmem:[%s289 + $0x3dc] sm:$0xf]
        %v581 = vld [vmem:[%s289 + $0x3e0] sm:$0xf]
        %v582 = vld [vmem:[%s289 + $0x3e4] sm:$0xf]
        %v583 = vld [vmem:[%s289 + $0x3e8] sm:$0xf]
        %v584 = vld [vmem:[%s289 + $0x3ec] sm:$0xf]
        %v585 = vld [vmem:[%s289 + $0x3f0] sm:$0xf]
        %v586 = vld [vmem:[%s289 + $0x3f4] sm:$0xf]
        %v587 = vld [vmem:[%s289 + $0x3f8] sm:$0xf]
        %v588 = vld [vmem:[%s289 + $0x3fc] sm:$0xf]
        %v589 = vld [vmem:[%s281] sm:$0x7f]
        %v590 = vpack.c.bf16 %v589, %v589
        %v593 = vunpack.c.l.b16 %v329
        %v594 = vunpack.c.l.b16 %v330
        %v595 = vpack.c.b16 %v594, %v593
        %vm596 = vcmask 56320
        %v598 = vsel %vm596, %v595, 0
        %vm600 = vcmask 1042432
        %vm601 = vcmask 1043456
        %v602 = vsel %vm600, 4294967295, 65535
        %v603 = vsel %vm601, %v602, 0
        %v605 = vand.u32 %v590, %v603
        %607 = vmatprep.subr.bf16.mxu0 0
        %608 = vmatpush1.bf16.msra.mxu0 0
        %609 = vmatprep.subr.bf16.mxu0 0
        %610 = vmatpush1.bf16.msra.mxu0 0
        %611 = vmatprep.subr.bf16.mxu0 0
        %612 = vmatpush1.bf16.msra.mxu0 0
        %613 = vmatprep.subr.bf16.mxu0 0
        %614 = vmatpush1.bf16.msra.mxu0 0
        %615 = vmatprep.subr.bf16.mxu0 0
        %616 = vmatpush1.bf16.msra.mxu0 0
        %617 = vmatprep.subr.bf16.mxu0 0
        %618 = vmatpush1.bf16.msra.mxu0 0
        %619 = vmatprep.subr.bf16.mxu0 0
        %620 = vmatpush1.bf16.msra.mxu0 0
        %621 = vmatprep.subr.bf16.mxu0 0
        %622 = vmatpush1.bf16.msra.mxu0 %v605
        %623 = vmatprep.subr.bf16.mxu0 0
        %624 = vmatpush2.bf16.msra.mxu0 0
        %625 = vmatprep.subr.bf16.mxu0 0
        %626 = vmatpush2.bf16.msra.mxu0 0
        %627 = vmatprep.subr.bf16.mxu0 0
        %628 = vmatpush2.bf16.msra.mxu0 0
        %629 = vmatprep.subr.bf16.mxu0 0
        %630 = vmatpush2.bf16.msra.mxu0 0
        %631 = vmatprep.subr.bf16.mxu0 0
        %632 = vmatpush2.bf16.msra.mxu0 0
        %633 = vmatprep.subr.bf16.mxu0 0
        %634 = vmatpush2.bf16.msra.mxu0 0
        %635 = vmatprep.subr.bf16.mxu0 0
        %636 = vmatpush2.bf16.msra.mxu0 0
        %637 = vmatprep.subr.bf16.mxu0 0
        %638 = vmatpush2.bf16.msra.mxu0 0
        %639 = vmatprep.mubr.bf16.mxu0 0
        %640 = vmatmul.mubr.bf16.gmra.mxu0 %v598
        %v641 = vpop.f32.mrf.mxu0
        %v642 = vadd.f32 %v331, %v641
        %v643 = vpop.f32.mrf.mxu0
        %v644 = vpop.f32.mrf.mxu0
        %v645 = vadd.f32 %v332, %v644
        %v646 = vpop.f32.mrf.mxu0
        %647 = vdwg.mxu0
        %v648 = vmax.f32 %v642, 0.0
        %v649 = vmax.f32 %v645, 0.0
        %s650 = scalar_lea.vmem %s281, 8 [#allocation2]
        %v651 = vld [vmem:[%s650] sm:$0x7f]
        %v652 = vpack.c.bf16 %v651, %v651
        %v654 = vand.u32 %v652, %v603
        %656 = vmatprep.subr.bf16.mxu0 0
        %657 = vmatpush1.bf16.msra.mxu0 0
        %658 = vmatprep.subr.bf16.mxu0 0
        %659 = vmatpush1.bf16.msra.mxu0 0
        %660 = vmatprep.subr.bf16.mxu0 0
        %661 = vmatpush1.bf16.msra.mxu0 0
        %662 = vmatprep.subr.bf16.mxu0 0
        %663 = vmatpush1.bf16.msra.mxu0 0
        %664 = vmatprep.subr.bf16.mxu0 0
        %665 = vmatpush1.bf16.msra.mxu0 0
        %666 = vmatprep.subr.bf16.mxu0 0
        %667 = vmatpush1.bf16.msra.mxu0 0
        %668 = vmatprep.subr.bf16.mxu0 0
        %669 = vmatpush1.bf16.msra.mxu0 0
        %670 = vmatprep.subr.bf16.mxu0 0
        %671 = vmatpush1.bf16.msra.mxu0 %v654
        %672 = vmatprep.subr.bf16.mxu0 0
        %673 = vmatpush2.bf16.msra.mxu0 0
        %674 = vmatprep.subr.bf16.mxu0 0
        %675 = vmatpush2.bf16.msra.mxu0 0
        %676 = vmatprep.subr.bf16.mxu0 0
        %677 = vmatpush2.bf16.msra.mxu0 0
        %678 = vmatprep.subr.bf16.mxu0 0
        %679 = vmatpush2.bf16.msra.mxu0 0
        %680 = vmatprep.subr.bf16.mxu0 0
        %681 = vmatpush2.bf16.msra.mxu0 0
        %682 = vmatprep.subr.bf16.mxu0 0
        %683 = vmatpush2.bf16.msra.mxu0 0
        %684 = vmatprep.subr.bf16.mxu0 0
        %685 = vmatpush2.bf16.msra.mxu0 0
        %686 = vmatprep.subr.bf16.mxu0 0
        %687 = vmatpush2.bf16.msra.mxu0 0
        %688 = vmatprep.mubr.bf16.mxu0 0
        %689 = vmatmul.mubr.bf16.gmra.mxu0 %v598
        %v690 = vpop.f32.mrf.mxu0
        %v691 = vadd.f32 %v331, %v690
        %v692 = vpop.f32.mrf.mxu0
        %v693 = vpop.f32.mrf.mxu0
        %v694 = vadd.f32 %v332, %v693
        %v695 = vpop.f32.mrf.mxu0
        %696 = vdwg.mxu0
        %v697 = vmax.f32 %v691, 0.0
        %v698 = vmax.f32 %v694, 0.0
        %v701 = vcombine.high %v648, %v648
        %v703 = vunpack.c.l.s4 1966171168
        %v704 = vunpack.c.0.s8 %v703
        %v705 = vlaneseq
        %v706 = vshrl.u32 %v705, 7
        %v707 = vsub.s32 %v704, %v706
        %v708 = vrot.slane %v648, %v707
        %v710 = vunpack.c.l.s4 1966171168
        %v711 = vunpack.c.0.s8 %v710
        %v712 = vlaneseq
        %v713 = vshrl.u32 %v712, 7
        %v714 = vsub.s32 %v711, %v713
        %v715 = vrot.slane %v701, %v714
        %v716 = vcombine.high %v708, %v708
        %v717 = vcombine.high %v715, %v715
        %v719 = vunpack.c.l.s4 1966171168
        %v720 = vunpack.c.0.s8 %v719
        %v721 = vlaneseq
        %v722 = vshrl.u32 %v721, 7
        %v723 = vsub.s32 %v720, %v722
        %v724 = vrot.slane %v708, %v723
        %v726 = vunpack.c.l.s4 1966171168
        %v727 = vunpack.c.0.s8 %v726
        %v728 = vlaneseq
        %v729 = vshrl.u32 %v728, 7
        %v730 = vsub.s32 %v727, %v729
        %v731 = vrot.slane %v715, %v730
        %v733 = vunpack.c.l.s4 1966171168
        %v734 = vunpack.c.0.s8 %v733
        %v735 = vlaneseq
        %v736 = vshrl.u32 %v735, 7
        %v737 = vsub.s32 %v734, %v736
        %v738 = vrot.slane %v716, %v737
        %v740 = vunpack.c.l.s4 1966171168
        %v741 = vunpack.c.0.s8 %v740
        %v742 = vlaneseq
        %v743 = vshrl.u32 %v742, 7
        %v744 = vsub.s32 %v741, %v743
        %v745 = vrot.slane %v717, %v744
        %v746 = vcombine.high %v724, %v724
        %v747 = vcombine.high %v731, %v731
        %v748 = vcombine.high %v738, %v738
        %v749 = vcombine.high %v745, %v745
        %v750 = vcombine.high %v649, %v649
        %v752 = vunpack.c.l.s4 1966171168
        %v753 = vunpack.c.0.s8 %v752
        %v754 = vlaneseq
        %v755 = vshrl.u32 %v754, 7
        %v756 = vsub.s32 %v753, %v755
        %v757 = vrot.slane %v649, %v756
        %v759 = vunpack.c.l.s4 1966171168
        %v760 = vunpack.c.0.s8 %v759
        %v761 = vlaneseq
        %v762 = vshrl.u32 %v761, 7
        %v763 = vsub.s32 %v760, %v762
        %v764 = vrot.slane %v750, %v763
        %v765 = vcombine.high %v757, %v757
        %v766 = vcombine.high %v764, %v764
        %v768 = vunpack.c.l.s4 1966171168
        %v769 = vunpack.c.0.s8 %v768
        %v770 = vlaneseq
        %v771 = vshrl.u32 %v770, 7
        %v772 = vsub.s32 %v769, %v771
        %v773 = vrot.slane %v757, %v772
        %v775 = vunpack.c.l.s4 1966171168
        %v776 = vunpack.c.0.s8 %v775
        %v777 = vlaneseq
        %v778 = vshrl.u32 %v777, 7
        %v779 = vsub.s32 %v776, %v778
        %v780 = vrot.slane %v764, %v779
        %v782 = vunpack.c.l.s4 1966171168
        %v783 = vunpack.c.0.s8 %v782
        %v784 = vlaneseq
        %v785 = vshrl.u32 %v784, 7
        %v786 = vsub.s32 %v783, %v785
        %v787 = vrot.slane %v765, %v786
        %v789 = vunpack.c.l.s4 1966171168
        %v790 = vunpack.c.0.s8 %v789
        %v791 = vlaneseq
        %v792 = vshrl.u32 %v791, 7
        %v793 = vsub.s32 %v790, %v792
        %v794 = vrot.slane %v766, %v793
        %v795 = vcombine.high %v773, %v773
        %v796 = vcombine.high %v780, %v780
        %v797 = vcombine.high %v787, %v787
        %v798 = vcombine.high %v794, %v794
        %v817 = vcombine.high %v697, %v697
        %v819 = vunpack.c.l.s4 1966171168
        %v820 = vunpack.c.0.s8 %v819
        %v821 = vlaneseq
        %v822 = vshrl.u32 %v821, 7
        %v823 = vsub.s32 %v820, %v822
        %v824 = vrot.slane %v697, %v823
        %v826 = vunpack.c.l.s4 1966171168
        %v827 = vunpack.c.0.s8 %v826
        %v828 = vlaneseq
        %v829 = vshrl.u32 %v828, 7
        %v830 = vsub.s32 %v827, %v829
        %v831 = vrot.slane %v817, %v830
        %v832 = vcombine.high %v824, %v824
        %v833 = vcombine.high %v831, %v831
        %v835 = vunpack.c.l.s4 1966171168
        %v836 = vunpack.c.0.s8 %v835
        %v837 = vlaneseq
        %v838 = vshrl.u32 %v837, 7
        %v839 = vsub.s32 %v836, %v838
        %v840 = vrot.slane %v824, %v839
        %v842 = vunpack.c.l.s4 1966171168
        %v843 = vunpack.c.0.s8 %v842
        %v844 = vlaneseq
        %v845 = vshrl.u32 %v844, 7
        %v846 = vsub.s32 %v843, %v845
        %v847 = vrot.slane %v831, %v846
        %v849 = vunpack.c.l.s4 1966171168
        %v850 = vunpack.c.0.s8 %v849
        %v851 = vlaneseq
        %v852 = vshrl.u32 %v851, 7
        %v853 = vsub.s32 %v850, %v852
        %v854 = vrot.slane %v832, %v853
        %v856 = vunpack.c.l.s4 1966171168
        %v857 = vunpack.c.0.s8 %v856
        %v858 = vlaneseq
        %v859 = vshrl.u32 %v858, 7
        %v860 = vsub.s32 %v857, %v859
        %v861 = vrot.slane %v833, %v860
        %v862 = vcombine.high %v840, %v840
        %v863 = vcombine.high %v847, %v847
        %v864 = vcombine.high %v854, %v854
        %v865 = vcombine.high %v861, %v861
        %v866 = vcombine.high %v698, %v698
        %v868 = vunpack.c.l.s4 1966171168
        %v869 = vunpack.c.0.s8 %v868
        %v870 = vlaneseq
        %v871 = vshrl.u32 %v870, 7
        %v872 = vsub.s32 %v869, %v871
        %v873 = vrot.slane %v698, %v872
        %v875 = vunpack.c.l.s4 1966171168
        %v876 = vunpack.c.0.s8 %v875
        %v877 = vlaneseq
        %v878 = vshrl.u32 %v877, 7
        %v879 = vsub.s32 %v876, %v878
        %v880 = vrot.slane %v866, %v879
        %v881 = vcombine.high %v873, %v873
        %v882 = vcombine.high %v880, %v880
        %v884 = vunpack.c.l.s4 1966171168
        %v885 = vunpack.c.0.s8 %v884
        %v886 = vlaneseq
        %v887 = vshrl.u32 %v886, 7
        %v888 = vsub.s32 %v885, %v887
        %v889 = vrot.slane %v873, %v888
        %v891 = vunpack.c.l.s4 1966171168
        %v892 = vunpack.c.0.s8 %v891
        %v893 = vlaneseq
        %v894 = vshrl.u32 %v893, 7
        %v895 = vsub.s32 %v892, %v894
        %v896 = vrot.slane %v880, %v895
        %v898 = vunpack.c.l.s4 1966171168
        %v899 = vunpack.c.0.s8 %v898
        %v900 = vlaneseq
        %v901 = vshrl.u32 %v900, 7
        %v902 = vsub.s32 %v899, %v901
        %v903 = vrot.slane %v881, %v902
        %v905 = vunpack.c.l.s4 1966171168
        %v906 = vunpack.c.0.s8 %v905
        %v907 = vlaneseq
        %v908 = vshrl.u32 %v907, 7
        %v909 = vsub.s32 %v906, %v908
        %v910 = vrot.slane %v882, %v909
        %v911 = vcombine.high %v889, %v889
        %v912 = vcombine.high %v896, %v896
        %v913 = vcombine.high %v903, %v903
        %v914 = vcombine.high %v910, %v910
        %v915 = vlaneseq
        %v916 = vshrl.u32 %v915, 7
        %v917 = vsub.s32 0, %v916
        %v918 = vrot.slane %v840, %v917
        %v919 = vlaneseq
        %v920 = vshrl.u32 %v919, 7
        %v921 = vsub.s32 0, %v920
        %v922 = vrot.slane %v854, %v921
        %v923 = vlaneseq
        %v924 = vshrl.u32 %v923, 7
        %v925 = vsub.s32 0, %v924
        %v926 = vrot.slane %v862, %v925
        %v927 = vlaneseq
        %v928 = vshrl.u32 %v927, 7
        %v929 = vsub.s32 0, %v928
        %v930 = vrot.slane %v864, %v929
        %v931 = vlaneseq
        %v932 = vshrl.u32 %v931, 7
        %v933 = vsub.s32 0, %v932
        %v934 = vrot.slane %v847, %v933
        %v935 = vlaneseq
        %v936 = vshrl.u32 %v935, 7
        %v937 = vsub.s32 0, %v936
        %v938 = vrot.slane %v861, %v937
        %v939 = vlaneseq
        %v940 = vshrl.u32 %v939, 7
        %v941 = vsub.s32 0, %v940
        %v942 = vrot.slane %v863, %v941
        %v943 = vlaneseq
        %v944 = vshrl.u32 %v943, 7
        %v945 = vsub.s32 0, %v944
        %v946 = vrot.slane %v865, %v945
        %v947 = vlaneseq
        %v948 = vshrl.u32 %v947, 7
        %v949 = vsub.s32 0, %v948
        %v950 = vrot.slane %v889, %v949
        %v951 = vlaneseq
        %v952 = vshrl.u32 %v951, 7
        %v953 = vsub.s32 0, %v952
        %v954 = vrot.slane %v903, %v953
        %v955 = vlaneseq
        %v956 = vshrl.u32 %v955, 7
        %v957 = vsub.s32 0, %v956
        %v958 = vrot.slane %v911, %v957
        %v959 = vlaneseq
        %v960 = vshrl.u32 %v959, 7
        %v961 = vsub.s32 0, %v960
        %v962 = vrot.slane %v913, %v961
        %v963 = vlaneseq
        %v964 = vshrl.u32 %v963, 7
        %v965 = vsub.s32 0, %v964
        %v966 = vrot.slane %v896, %v965
        %v967 = vlaneseq
        %v968 = vshrl.u32 %v967, 7
        %v969 = vsub.s32 0, %v968
        %v970 = vrot.slane %v910, %v969
        %v971 = vlaneseq
        %v972 = vshrl.u32 %v971, 7
        %v973 = vsub.s32 0, %v972
        %v974 = vrot.slane %v912, %v973
        %v975 = vlaneseq
        %v976 = vshrl.u32 %v975, 7
        %v977 = vsub.s32 0, %v976
        %v978 = vrot.slane %v914, %v977
        %vm995 = vcmask 1040384
        %v996 = vsel %vm995, %v724, %v918
        %v997 = vsel %vm995, %v738, %v922
        %v998 = vsel %vm995, %v746, %v926
        %v999 = vsel %vm995, %v748, %v930
        %v1000 = vsel %vm995, %v731, %v934
        %v1001 = vsel %vm995, %v745, %v938
        %v1002 = vsel %vm995, %v747, %v942
        %v1003 = vsel %vm995, %v749, %v946
        %v1004 = vsel %vm995, %v773, %v950
        %v1005 = vsel %vm995, %v787, %v954
        %v1006 = vsel %vm995, %v795, %v958
        %v1007 = vsel %vm995, %v797, %v962
        %v1008 = vsel %vm995, %v780, %v966
        %v1009 = vsel %vm995, %v794, %v970
        %v1010 = vsel %vm995, %v796, %v974
        %v1011 = vsel %vm995, %v798, %v978
        %v1012 = vpack.c.bf16 %v996, %v996
        %v1013 = vpack.c.bf16 %v997, %v997
        %v1014 = vpack.c.bf16 %v998, %v998
        %v1015 = vpack.c.bf16 %v999, %v999
        %v1016 = vpack.c.bf16 %v1000, %v1000
        %v1017 = vpack.c.bf16 %v1001, %v1001
        %v1018 = vpack.c.bf16 %v1002, %v1002
        %v1019 = vpack.c.bf16 %v1003, %v1003
        %v1020 = vpack.c.bf16 %v1004, %v1004
        %v1021 = vpack.c.bf16 %v1005, %v1005
        %v1022 = vpack.c.bf16 %v1006, %v1006
        %v1023 = vpack.c.bf16 %v1007, %v1007
        %v1024 = vpack.c.bf16 %v1008, %v1008
        %v1025 = vpack.c.bf16 %v1009, %v1009
        %v1026 = vpack.c.bf16 %v1010, %v1010
        %v1027 = vpack.c.bf16 %v1011, %v1011
        %v1044 = vunpack.c.l.b16 %v333
        %v1045 = vunpack.c.l.b16 %v334
        %v1046 = vunpack.c.l.b16 %v335
        %v1047 = vunpack.c.l.b16 %v336
        %v1048 = vunpack.c.l.b16 %v337
        %v1049 = vunpack.c.l.b16 %v338
        %v1050 = vunpack.c.l.b16 %v339
        %v1051 = vunpack.c.l.b16 %v340
        %v1052 = vunpack.c.l.b16 %v341
        %v1053 = vunpack.c.l.b16 %v342
        %v1054 = vunpack.c.l.b16 %v343
        %v1055 = vunpack.c.l.b16 %v344
        %v1056 = vunpack.c.l.b16 %v345
        %v1057 = vunpack.c.l.b16 %v346
        %v1058 = vunpack.c.l.b16 %v347
        %v1059 = vunpack.c.l.b16 %v348
        %v1060 = vpack.c.b16 %v1045, %v1044
        %v1061 = vpack.c.b16 %v1047, %v1046
        %v1062 = vpack.c.b16 %v1049, %v1048
        %v1063 = vpack.c.b16 %v1051, %v1050
        %v1064 = vpack.c.b16 %v1053, %v1052
        %v1065 = vpack.c.b16 %v1055, %v1054
        %v1066 = vpack.c.b16 %v1057, %v1056
        %v1067 = vpack.c.b16 %v1059, %v1058
        %1076 = vmatprep.subr.bf16.mxu0 0
        %1077 = vmatpush1.bf16.msra.mxu0 %v1067
        %1078 = vmatprep.subr.bf16.mxu0 0
        %1079 = vmatpush1.bf16.msra.mxu0 %v1066
        %1080 = vmatprep.subr.bf16.mxu0 0
        %1081 = vmatpush1.bf16.msra.mxu0 %v1065
        %1082 = vmatprep.subr.bf16.mxu0 0
        %1083 = vmatpush1.bf16.msra.mxu0 %v1064
        %1084 = vmatprep.subr.bf16.mxu0 0
        %1085 = vmatpush1.bf16.msra.mxu0 %v1063
        %1086 = vmatprep.subr.bf16.mxu0 0
        %1087 = vmatpush1.bf16.msra.mxu0 %v1062
        %1088 = vmatprep.subr.bf16.mxu0 0
        %1089 = vmatpush1.bf16.msra.mxu0 %v1061
        %1090 = vmatprep.subr.bf16.mxu0 0
        %1091 = vmatpush1.bf16.msra.mxu0 %v1060
        %1092 = vmatprep.subr.bf16.mxu0 0
        %1093 = vmatpush2.bf16.msra.mxu0 0
        %1094 = vmatprep.subr.bf16.mxu0 0
        %1095 = vmatpush2.bf16.msra.mxu0 0
        %1096 = vmatprep.subr.bf16.mxu0 0
        %1097 = vmatpush2.bf16.msra.mxu0 0
        %1098 = vmatprep.subr.bf16.mxu0 0
        %1099 = vmatpush2.bf16.msra.mxu0 0
        %1100 = vmatprep.subr.bf16.mxu0 0
        %1101 = vmatpush2.bf16.msra.mxu0 0
        %1102 = vmatprep.subr.bf16.mxu0 0
        %1103 = vmatpush2.bf16.msra.mxu0 0
        %1104 = vmatprep.subr.bf16.mxu0 0
        %1105 = vmatpush2.bf16.msra.mxu0 0
        %1106 = vmatprep.subr.bf16.mxu0 0
        %1107 = vmatpush2.bf16.msra.mxu0 0
        %1108 = vmatprep.mubr.bf16.mxu0 0
        %1109 = vmatmul.mubr.bf16.gmra.mxu0 %v1012
        %v1110 = vpop.f32.mrf.mxu0
        %v1111 = vadd.f32 0.0, %v1110
        %v1112 = vpop.f32.mrf.mxu0
        %v1113 = vpop.f32.mrf.mxu0
        %v1114 = vpop.f32.mrf.mxu0
        %1115 = vdwg.mxu0
        %v1132 = vunpack.c.l.b16 %v349
        %v1133 = vunpack.c.l.b16 %v350
        %v1134 = vunpack.c.l.b16 %v351
        %v1135 = vunpack.c.l.b16 %v352
        %v1136 = vunpack.c.l.b16 %v353
        %v1137 = vunpack.c.l.b16 %v354
        %v1138 = vunpack.c.l.b16 %v355
        %v1139 = vunpack.c.l.b16 %v356
        %v1140 = vunpack.c.l.b16 %v357
        %v1141 = vunpack.c.l.b16 %v358
        %v1142 = vunpack.c.l.b16 %v359
        %v1143 = vunpack.c.l.b16 %v360
        %v1144 = vunpack.c.l.b16 %v361
        %v1145 = vunpack.c.l.b16 %v362
        %v1146 = vunpack.c.l.b16 %v363
        %v1147 = vunpack.c.l.b16 %v364
        %v1148 = vpack.c.b16 %v1133, %v1132
        %v1149 = vpack.c.b16 %v1135, %v1134
        %v1150 = vpack.c.b16 %v1137, %v1136
        %v1151 = vpack.c.b16 %v1139, %v1138
        %v1152 = vpack.c.b16 %v1141, %v1140
        %v1153 = vpack.c.b16 %v1143, %v1142
        %v1154 = vpack.c.b16 %v1145, %v1144
        %v1155 = vpack.c.b16 %v1147, %v1146
        %1164 = vmatprep.subr.bf16.mxu0 0
        %1165 = vmatpush1.bf16.msra.mxu0 %v1155
        %1166 = vmatprep.subr.bf16.mxu0 0
        %1167 = vmatpush1.bf16.msra.mxu0 %v1154
        %1168 = vmatprep.subr.bf16.mxu0 0
        %1169 = vmatpush1.bf16.msra.mxu0 %v1153
        %1170 = vmatprep.subr.bf16.mxu0 0
        %1171 = vmatpush1.bf16.msra.mxu0 %v1152
        %1172 = vmatprep.subr.bf16.mxu0 0
        %1173 = vmatpush1.bf16.msra.mxu0 %v1151
        %1174 = vmatprep.subr.bf16.mxu0 0
        %1175 = vmatpush1.bf16.msra.mxu0 %v1150
        %1176 = vmatprep.subr.bf16.mxu0 0
        %1177 = vmatpush1.bf16.msra.mxu0 %v1149
        %1178 = vmatprep.subr.bf16.mxu0 0
        %1179 = vmatpush1.bf16.msra.mxu0 %v1148
        %1180 = vmatprep.subr.bf16.mxu0 0
        %1181 = vmatpush2.bf16.msra.mxu0 0
        %1182 = vmatprep.subr.bf16.mxu0 0
        %1183 = vmatpush2.bf16.msra.mxu0 0
        %1184 = vmatprep.subr.bf16.mxu0 0
        %1185 = vmatpush2.bf16.msra.mxu0 0
        %1186 = vmatprep.subr.bf16.mxu0 0
        %1187 = vmatpush2.bf16.msra.mxu0 0
        %1188 = vmatprep.subr.bf16.mxu0 0
        %1189 = vmatpush2.bf16.msra.mxu0 0
        %1190 = vmatprep.subr.bf16.mxu0 0
        %1191 = vmatpush2.bf16.msra.mxu0 0
        %1192 = vmatprep.subr.bf16.mxu0 0
        %1193 = vmatpush2.bf16.msra.mxu0 0
        %1194 = vmatprep.subr.bf16.mxu0 0
        %1195 = vmatpush2.bf16.msra.mxu0 0
        %1196 = vmatprep.mubr.bf16.mxu0 0
        %1197 = vmatmul.mubr.bf16.gmra.mxu0 %v1013
        %v1198 = vpop.f32.mrf.mxu0
        %v1199 = vadd.f32 0.0, %v1198
        %v1200 = vpop.f32.mrf.mxu0
        %v1201 = vpop.f32.mrf.mxu0
        %v1202 = vpop.f32.mrf.mxu0
        %1203 = vdwg.mxu0
        %v1220 = vunpack.c.l.b16 %v365
        %v1221 = vunpack.c.l.b16 %v366
        %v1222 = vunpack.c.l.b16 %v367
        %v1223 = vunpack.c.l.b16 %v368
        %v1224 = vunpack.c.l.b16 %v369
        %v1225 = vunpack.c.l.b16 %v370
        %v1226 = vunpack.c.l.b16 %v371
        %v1227 = vunpack.c.l.b16 %v372
        %v1228 = vunpack.c.l.b16 %v373
        %v1229 = vunpack.c.l.b16 %v374
        %v1230 = vunpack.c.l.b16 %v375
        %v1231 = vunpack.c.l.b16 %v376
        %v1232 = vunpack.c.l.b16 %v377
        %v1233 = vunpack.c.l.b16 %v378
        %v1234 = vunpack.c.l.b16 %v379
        %v1235 = vunpack.c.l.b16 %v380
        %v1236 = vpack.c.b16 %v1221, %v1220
        %v1237 = vpack.c.b16 %v1223, %v1222
        %v1238 = vpack.c.b16 %v1225, %v1224
        %v1239 = vpack.c.b16 %v1227, %v1226
        %v1240 = vpack.c.b16 %v1229, %v1228
        %v1241 = vpack.c.b16 %v1231, %v1230
        %v1242 = vpack.c.b16 %v1233, %v1232
        %v1243 = vpack.c.b16 %v1235, %v1234
        %1252 = vmatprep.subr.bf16.mxu0 0
        %1253 = vmatpush1.bf16.msra.mxu0 %v1243
        %1254 = vmatprep.subr.bf16.mxu0 0
        %1255 = vmatpush1.bf16.msra.mxu0 %v1242
        %1256 = vmatprep.subr.bf16.mxu0 0
        %1257 = vmatpush1.bf16.msra.mxu0 %v1241
        %1258 = vmatprep.subr.bf16.mxu0 0
        %1259 = vmatpush1.bf16.msra.mxu0 %v1240
        %1260 = vmatprep.subr.bf16.mxu0 0
        %1261 = vmatpush1.bf16.msra.mxu0 %v1239
        %1262 = vmatprep.subr.bf16.mxu0 0
        %1263 = vmatpush1.bf16.msra.mxu0 %v1238
        %1264 = vmatprep.subr.bf16.mxu0 0
        %1265 = vmatpush1.bf16.msra.mxu0 %v1237
        %1266 = vmatprep.subr.bf16.mxu0 0
        %1267 = vmatpush1.bf16.msra.mxu0 %v1236
        %1268 = vmatprep.subr.bf16.mxu0 0
        %1269 = vmatpush2.bf16.msra.mxu0 0
        %1270 = vmatprep.subr.bf16.mxu0 0
        %1271 = vmatpush2.bf16.msra.mxu0 0
        %1272 = vmatprep.subr.bf16.mxu0 0
        %1273 = vmatpush2.bf16.msra.mxu0 0
        %1274 = vmatprep.subr.bf16.mxu0 0
        %1275 = vmatpush2.bf16.msra.mxu0 0
        %1276 = vmatprep.subr.bf16.mxu0 0
        %1277 = vmatpush2.bf16.msra.mxu0 0
        %1278 = vmatprep.subr.bf16.mxu0 0
        %1279 = vmatpush2.bf16.msra.mxu0 0
        %1280 = vmatprep.subr.bf16.mxu0 0
        %1281 = vmatpush2.bf16.msra.mxu0 0
        %1282 = vmatprep.subr.bf16.mxu0 0
        %1283 = vmatpush2.bf16.msra.mxu0 0
        %1284 = vmatprep.mubr.bf16.mxu0 0
        %1285 = vmatmul.mubr.bf16.gmra.mxu0 %v1014
        %v1286 = vpop.f32.mrf.mxu0
        %v1287 = vadd.f32 0.0, %v1286
        %v1288 = vpop.f32.mrf.mxu0
        %v1289 = vpop.f32.mrf.mxu0
        %v1290 = vpop.f32.mrf.mxu0
        %1291 = vdwg.mxu0
        %v1308 = vunpack.c.l.b16 %v381
        %v1309 = vunpack.c.l.b16 %v382
        %v1310 = vunpack.c.l.b16 %v383
        %v1311 = vunpack.c.l.b16 %v384
        %v1312 = vunpack.c.l.b16 %v385
        %v1313 = vunpack.c.l.b16 %v386
        %v1314 = vunpack.c.l.b16 %v387
        %v1315 = vunpack.c.l.b16 %v388
        %v1316 = vunpack.c.l.b16 %v389
        %v1317 = vunpack.c.l.b16 %v390
        %v1318 = vunpack.c.l.b16 %v391
        %v1319 = vunpack.c.l.b16 %v392
        %v1320 = vunpack.c.l.b16 %v393
        %v1321 = vunpack.c.l.b16 %v394
        %v1322 = vunpack.c.l.b16 %v395
        %v1323 = vunpack.c.l.b16 %v396
        %v1324 = vpack.c.b16 %v1309, %v1308
        %v1325 = vpack.c.b16 %v1311, %v1310
        %v1326 = vpack.c.b16 %v1313, %v1312
        %v1327 = vpack.c.b16 %v1315, %v1314
        %v1328 = vpack.c.b16 %v1317, %v1316
        %v1329 = vpack.c.b16 %v1319, %v1318
        %v1330 = vpack.c.b16 %v1321, %v1320
        %v1331 = vpack.c.b16 %v1323, %v1322
        %1340 = vmatprep.subr.bf16.mxu0 0
        %1341 = vmatpush1.bf16.msra.mxu0 %v1331
        %1342 = vmatprep.subr.bf16.mxu0 0
        %1343 = vmatpush1.bf16.msra.mxu0 %v1330
        %1344 = vmatprep.subr.bf16.mxu0 0
        %1345 = vmatpush1.bf16.msra.mxu0 %v1329
        %1346 = vmatprep.subr.bf16.mxu0 0
        %1347 = vmatpush1.bf16.msra.mxu0 %v1328
        %1348 = vmatprep.subr.bf16.mxu0 0
        %1349 = vmatpush1.bf16.msra.mxu0 %v1327
        %1350 = vmatprep.subr.bf16.mxu0 0
        %1351 = vmatpush1.bf16.msra.mxu0 %v1326
        %1352 = vmatprep.subr.bf16.mxu0 0
        %1353 = vmatpush1.bf16.msra.mxu0 %v1325
        %1354 = vmatprep.subr.bf16.mxu0 0
        %1355 = vmatpush1.bf16.msra.mxu0 %v1324
        %1356 = vmatprep.subr.bf16.mxu0 0
        %1357 = vmatpush2.bf16.msra.mxu0 0
        %1358 = vmatprep.subr.bf16.mxu0 0
        %1359 = vmatpush2.bf16.msra.mxu0 0
        %1360 = vmatprep.subr.bf16.mxu0 0
        %1361 = vmatpush2.bf16.msra.mxu0 0
        %1362 = vmatprep.subr.bf16.mxu0 0
        %1363 = vmatpush2.bf16.msra.mxu0 0
        %1364 = vmatprep.subr.bf16.mxu0 0
        %1365 = vmatpush2.bf16.msra.mxu0 0
        %1366 = vmatprep.subr.bf16.mxu0 0
        %1367 = vmatpush2.bf16.msra.mxu0 0
        %1368 = vmatprep.subr.bf16.mxu0 0
        %1369 = vmatpush2.bf16.msra.mxu0 0
        %1370 = vmatprep.subr.bf16.mxu0 0
        %1371 = vmatpush2.bf16.msra.mxu0 0
        %1372 = vmatprep.mubr.bf16.mxu0 0
        %1373 = vmatmul.mubr.bf16.gmra.mxu0 %v1015
        %v1374 = vpop.f32.mrf.mxu0
        %v1375 = vadd.f32 0.0, %v1374
        %v1376 = vpop.f32.mrf.mxu0
        %v1377 = vpop.f32.mrf.mxu0
        %v1378 = vpop.f32.mrf.mxu0
        %1379 = vdwg.mxu0
        %v1396 = vunpack.c.l.b16 %v397
        %v1397 = vunpack.c.l.b16 %v398
        %v1398 = vunpack.c.l.b16 %v399
        %v1399 = vunpack.c.l.b16 %v400
        %v1400 = vunpack.c.l.b16 %v401
        %v1401 = vunpack.c.l.b16 %v402
        %v1402 = vunpack.c.l.b16 %v403
        %v1403 = vunpack.c.l.b16 %v404
        %v1404 = vunpack.c.l.b16 %v405
        %v1405 = vunpack.c.l.b16 %v406
        %v1406 = vunpack.c.l.b16 %v407
        %v1407 = vunpack.c.l.b16 %v408
        %v1408 = vunpack.c.l.b16 %v409
        %v1409 = vunpack.c.l.b16 %v410
        %v1410 = vunpack.c.l.b16 %v411
        %v1411 = vunpack.c.l.b16 %v412
        %v1412 = vpack.c.b16 %v1397, %v1396
        %v1413 = vpack.c.b16 %v1399, %v1398
        %v1414 = vpack.c.b16 %v1401, %v1400
        %v1415 = vpack.c.b16 %v1403, %v1402
        %v1416 = vpack.c.b16 %v1405, %v1404
        %v1417 = vpack.c.b16 %v1407, %v1406
        %v1418 = vpack.c.b16 %v1409, %v1408
        %v1419 = vpack.c.b16 %v1411, %v1410
        %1428 = vmatprep.subr.bf16.mxu0 0
        %1429 = vmatpush1.bf16.msra.mxu0 %v1419
        %1430 = vmatprep.subr.bf16.mxu0 0
        %1431 = vmatpush1.bf16.msra.mxu0 %v1418
        %1432 = vmatprep.subr.bf16.mxu0 0
        %1433 = vmatpush1.bf16.msra.mxu0 %v1417
        %1434 = vmatprep.subr.bf16.mxu0 0
        %1435 = vmatpush1.bf16.msra.mxu0 %v1416
        %1436 = vmatprep.subr.bf16.mxu0 0
        %1437 = vmatpush1.bf16.msra.mxu0 %v1415
        %1438 = vmatprep.subr.bf16.mxu0 0
        %1439 = vmatpush1.bf16.msra.mxu0 %v1414
        %1440 = vmatprep.subr.bf16.mxu0 0
        %1441 = vmatpush1.bf16.msra.mxu0 %v1413
        %1442 = vmatprep.subr.bf16.mxu0 0
        %1443 = vmatpush1.bf16.msra.mxu0 %v1412
        %1444 = vmatprep.subr.bf16.mxu0 0
        %1445 = vmatpush2.bf16.msra.mxu0 0
        %1446 = vmatprep.subr.bf16.mxu0 0
        %1447 = vmatpush2.bf16.msra.mxu0 0
        %1448 = vmatprep.subr.bf16.mxu0 0
        %1449 = vmatpush2.bf16.msra.mxu0 0
        %1450 = vmatprep.subr.bf16.mxu0 0
        %1451 = vmatpush2.bf16.msra.mxu0 0
        %1452 = vmatprep.subr.bf16.mxu0 0
        %1453 = vmatpush2.bf16.msra.mxu0 0
        %1454 = vmatprep.subr.bf16.mxu0 0
        %1455 = vmatpush2.bf16.msra.mxu0 0
        %1456 = vmatprep.subr.bf16.mxu0 0
        %1457 = vmatpush2.bf16.msra.mxu0 0
        %1458 = vmatprep.subr.bf16.mxu0 0
        %1459 = vmatpush2.bf16.msra.mxu0 0
        %1460 = vmatprep.mubr.bf16.mxu0 0
        %1461 = vmatmul.mubr.bf16.gmra.mxu0 %v1016
        %v1462 = vpop.f32.mrf.mxu0
        %v1463 = vadd.f32 0.0, %v1462
        %v1464 = vpop.f32.mrf.mxu0
        %v1465 = vpop.f32.mrf.mxu0
        %v1466 = vpop.f32.mrf.mxu0
        %1467 = vdwg.mxu0
        %v1484 = vunpack.c.l.b16 %v413
        %v1485 = vunpack.c.l.b16 %v414
        %v1486 = vunpack.c.l.b16 %v415
        %v1487 = vunpack.c.l.b16 %v416
        %v1488 = vunpack.c.l.b16 %v417
        %v1489 = vunpack.c.l.b16 %v418
        %v1490 = vunpack.c.l.b16 %v419
        %v1491 = vunpack.c.l.b16 %v420
        %v1492 = vunpack.c.l.b16 %v421
        %v1493 = vunpack.c.l.b16 %v422
        %v1494 = vunpack.c.l.b16 %v423
        %v1495 = vunpack.c.l.b16 %v424
        %v1496 = vunpack.c.l.b16 %v425
        %v1497 = vunpack.c.l.b16 %v426
        %v1498 = vunpack.c.l.b16 %v427
        %v1499 = vunpack.c.l.b16 %v428
        %v1500 = vpack.c.b16 %v1485, %v1484
        %v1501 = vpack.c.b16 %v1487, %v1486
        %v1502 = vpack.c.b16 %v1489, %v1488
        %v1503 = vpack.c.b16 %v1491, %v1490
        %v1504 = vpack.c.b16 %v1493, %v1492
        %v1505 = vpack.c.b16 %v1495, %v1494
        %v1506 = vpack.c.b16 %v1497, %v1496
        %v1507 = vpack.c.b16 %v1499, %v1498
        %1516 = vmatprep.subr.bf16.mxu0 0
        %1517 = vmatpush1.bf16.msra.mxu0 %v1507
        %1518 = vmatprep.subr.bf16.mxu0 0
        %1519 = vmatpush1.bf16.msra.mxu0 %v1506
        %1520 = vmatprep.subr.bf16.mxu0 0
        %1521 = vmatpush1.bf16.msra.mxu0 %v1505
        %1522 = vmatprep.subr.bf16.mxu0 0
        %1523 = vmatpush1.bf16.msra.mxu0 %v1504
        %1524 = vmatprep.subr.bf16.mxu0 0
        %1525 = vmatpush1.bf16.msra.mxu0 %v1503
        %1526 = vmatprep.subr.bf16.mxu0 0
        %1527 = vmatpush1.bf16.msra.mxu0 %v1502
        %1528 = vmatprep.subr.bf16.mxu0 0
        %1529 = vmatpush1.bf16.msra.mxu0 %v1501
        %1530 = vmatprep.subr.bf16.mxu0 0
        %1531 = vmatpush1.bf16.msra.mxu0 %v1500
        %1532 = vmatprep.subr.bf16.mxu0 0
        %1533 = vmatpush2.bf16.msra.mxu0 0
        %1534 = vmatprep.subr.bf16.mxu0 0
        %1535 = vmatpush2.bf16.msra.mxu0 0
        %1536 = vmatprep.subr.bf16.mxu0 0
        %1537 = vmatpush2.bf16.msra.mxu0 0
        %1538 = vmatprep.subr.bf16.mxu0 0
        %1539 = vmatpush2.bf16.msra.mxu0 0
        %1540 = vmatprep.subr.bf16.mxu0 0
        %1541 = vmatpush2.bf16.msra.mxu0 0
        %1542 = vmatprep.subr.bf16.mxu0 0
        %1543 = vmatpush2.bf16.msra.mxu0 0
        %1544 = vmatprep.subr.bf16.mxu0 0
        %1545 = vmatpush2.bf16.msra.mxu0 0
        %1546 = vmatprep.subr.bf16.mxu0 0
        %1547 = vmatpush2.bf16.msra.mxu0 0
        %1548 = vmatprep.mubr.bf16.mxu0 0
        %1549 = vmatmul.mubr.bf16.gmra.mxu0 %v1017
        %v1550 = vpop.f32.mrf.mxu0
        %v1551 = vadd.f32 0.0, %v1550
        %v1552 = vpop.f32.mrf.mxu0
        %v1553 = vpop.f32.mrf.mxu0
        %v1554 = vpop.f32.mrf.mxu0
        %1555 = vdwg.mxu0
        %v1572 = vunpack.c.l.b16 %v429
        %v1573 = vunpack.c.l.b16 %v430
        %v1574 = vunpack.c.l.b16 %v431
        %v1575 = vunpack.c.l.b16 %v432
        %v1576 = vunpack.c.l.b16 %v433
        %v1577 = vunpack.c.l.b16 %v434
        %v1578 = vunpack.c.l.b16 %v435
        %v1579 = vunpack.c.l.b16 %v436
        %v1580 = vunpack.c.l.b16 %v437
        %v1581 = vunpack.c.l.b16 %v438
        %v1582 = vunpack.c.l.b16 %v439
        %v1583 = vunpack.c.l.b16 %v440
        %v1584 = vunpack.c.l.b16 %v441
        %v1585 = vunpack.c.l.b16 %v442
        %v1586 = vunpack.c.l.b16 %v443
        %v1587 = vunpack.c.l.b16 %v444
        %v1588 = vpack.c.b16 %v1573, %v1572
        %v1589 = vpack.c.b16 %v1575, %v1574
        %v1590 = vpack.c.b16 %v1577, %v1576
        %v1591 = vpack.c.b16 %v1579, %v1578
        %v1592 = vpack.c.b16 %v1581, %v1580
        %v1593 = vpack.c.b16 %v1583, %v1582
        %v1594 = vpack.c.b16 %v1585, %v1584
        %v1595 = vpack.c.b16 %v1587, %v1586
        %1604 = vmatprep.subr.bf16.mxu0 0
        %1605 = vmatpush1.bf16.msra.mxu0 %v1595
        %1606 = vmatprep.subr.bf16.mxu0 0
        %1607 = vmatpush1.bf16.msra.mxu0 %v1594
        %1608 = vmatprep.subr.bf16.mxu0 0
        %1609 = vmatpush1.bf16.msra.mxu0 %v1593
        %1610 = vmatprep.subr.bf16.mxu0 0
        %1611 = vmatpush1.bf16.msra.mxu0 %v1592
        %1612 = vmatprep.subr.bf16.mxu0 0
        %1613 = vmatpush1.bf16.msra.mxu0 %v1591
        %1614 = vmatprep.subr.bf16.mxu0 0
        %1615 = vmatpush1.bf16.msra.mxu0 %v1590
        %1616 = vmatprep.subr.bf16.mxu0 0
        %1617 = vmatpush1.bf16.msra.mxu0 %v1589
        %1618 = vmatprep.subr.bf16.mxu0 0
        %1619 = vmatpush1.bf16.msra.mxu0 %v1588
        %1620 = vmatprep.subr.bf16.mxu0 0
        %1621 = vmatpush2.bf16.msra.mxu0 0
        %1622 = vmatprep.subr.bf16.mxu0 0
        %1623 = vmatpush2.bf16.msra.mxu0 0
        %1624 = vmatprep.subr.bf16.mxu0 0
        %1625 = vmatpush2.bf16.msra.mxu0 0
        %1626 = vmatprep.subr.bf16.mxu0 0
        %1627 = vmatpush2.bf16.msra.mxu0 0
        %1628 = vmatprep.subr.bf16.mxu0 0
        %1629 = vmatpush2.bf16.msra.mxu0 0
        %1630 = vmatprep.subr.bf16.mxu0 0
        %1631 = vmatpush2.bf16.msra.mxu0 0
        %1632 = vmatprep.subr.bf16.mxu0 0
        %1633 = vmatpush2.bf16.msra.mxu0 0
        %1634 = vmatprep.subr.bf16.mxu0 0
        %1635 = vmatpush2.bf16.msra.mxu0 0
        %1636 = vmatprep.mubr.bf16.mxu0 0
        %1637 = vmatmul.mubr.bf16.gmra.mxu0 %v1018
        %v1638 = vpop.f32.mrf.mxu0
        %v1639 = vadd.f32 0.0, %v1638
        %v1640 = vpop.f32.mrf.mxu0
        %v1641 = vpop.f32.mrf.mxu0
        %v1642 = vpop.f32.mrf.mxu0
        %1643 = vdwg.mxu0
        %v1660 = vunpack.c.l.b16 %v445
        %v1661 = vunpack.c.l.b16 %v446
        %v1662 = vunpack.c.l.b16 %v447
        %v1663 = vunpack.c.l.b16 %v448
        %v1664 = vunpack.c.l.b16 %v449
        %v1665 = vunpack.c.l.b16 %v450
        %v1666 = vunpack.c.l.b16 %v451
        %v1667 = vunpack.c.l.b16 %v452
        %v1668 = vunpack.c.l.b16 %v453
        %v1669 = vunpack.c.l.b16 %v454
        %v1670 = vunpack.c.l.b16 %v455
        %v1671 = vunpack.c.l.b16 %v456
        %v1672 = vunpack.c.l.b16 %v457
        %v1673 = vunpack.c.l.b16 %v458
        %v1674 = vunpack.c.l.b16 %v459
        %v1675 = vunpack.c.l.b16 %v460
        %v1676 = vpack.c.b16 %v1661, %v1660
        %v1677 = vpack.c.b16 %v1663, %v1662
        %v1678 = vpack.c.b16 %v1665, %v1664
        %v1679 = vpack.c.b16 %v1667, %v1666
        %v1680 = vpack.c.b16 %v1669, %v1668
        %v1681 = vpack.c.b16 %v1671, %v1670
        %v1682 = vpack.c.b16 %v1673, %v1672
        %v1683 = vpack.c.b16 %v1675, %v1674
        %1692 = vmatprep.subr.bf16.mxu0 0
        %1693 = vmatpush1.bf16.msra.mxu0 %v1683
        %1694 = vmatprep.subr.bf16.mxu0 0
        %1695 = vmatpush1.bf16.msra.mxu0 %v1682
        %1696 = vmatprep.subr.bf16.mxu0 0
        %1697 = vmatpush1.bf16.msra.mxu0 %v1681
        %1698 = vmatprep.subr.bf16.mxu0 0
        %1699 = vmatpush1.bf16.msra.mxu0 %v1680
        %1700 = vmatprep.subr.bf16.mxu0 0
        %1701 = vmatpush1.bf16.msra.mxu0 %v1679
        %1702 = vmatprep.subr.bf16.mxu0 0
        %1703 = vmatpush1.bf16.msra.mxu0 %v1678
        %1704 = vmatprep.subr.bf16.mxu0 0
        %1705 = vmatpush1.bf16.msra.mxu0 %v1677
        %1706 = vmatprep.subr.bf16.mxu0 0
        %1707 = vmatpush1.bf16.msra.mxu0 %v1676
        %1708 = vmatprep.subr.bf16.mxu0 0
        %1709 = vmatpush2.bf16.msra.mxu0 0
        %1710 = vmatprep.subr.bf16.mxu0 0
        %1711 = vmatpush2.bf16.msra.mxu0 0
        %1712 = vmatprep.subr.bf16.mxu0 0
        %1713 = vmatpush2.bf16.msra.mxu0 0
        %1714 = vmatprep.subr.bf16.mxu0 0
        %1715 = vmatpush2.bf16.msra.mxu0 0
        %1716 = vmatprep.subr.bf16.mxu0 0
        %1717 = vmatpush2.bf16.msra.mxu0 0
        %1718 = vmatprep.subr.bf16.mxu0 0
        %1719 = vmatpush2.bf16.msra.mxu0 0
        %1720 = vmatprep.subr.bf16.mxu0 0
        %1721 = vmatpush2.bf16.msra.mxu0 0
        %1722 = vmatprep.subr.bf16.mxu0 0
        %1723 = vmatpush2.bf16.msra.mxu0 0
        %1724 = vmatprep.mubr.bf16.mxu0 0
        %1725 = vmatmul.mubr.bf16.gmra.mxu0 %v1019
        %v1726 = vpop.f32.mrf.mxu0
        %v1727 = vadd.f32 0.0, %v1726
        %v1728 = vpop.f32.mrf.mxu0
        %v1729 = vpop.f32.mrf.mxu0
        %v1730 = vpop.f32.mrf.mxu0
        %1731 = vdwg.mxu0
        %v1748 = vunpack.c.l.b16 %v461
        %v1749 = vunpack.c.l.b16 %v462
        %v1750 = vunpack.c.l.b16 %v463
        %v1751 = vunpack.c.l.b16 %v464
        %v1752 = vunpack.c.l.b16 %v465
        %v1753 = vunpack.c.l.b16 %v466
        %v1754 = vunpack.c.l.b16 %v467
        %v1755 = vunpack.c.l.b16 %v468
        %v1756 = vunpack.c.l.b16 %v469
        %v1757 = vunpack.c.l.b16 %v470
        %v1758 = vunpack.c.l.b16 %v471
        %v1759 = vunpack.c.l.b16 %v472
        %v1760 = vunpack.c.l.b16 %v473
        %v1761 = vunpack.c.l.b16 %v474
        %v1762 = vunpack.c.l.b16 %v475
        %v1763 = vunpack.c.l.b16 %v476
        %v1764 = vpack.c.b16 %v1749, %v1748
        %v1765 = vpack.c.b16 %v1751, %v1750
        %v1766 = vpack.c.b16 %v1753, %v1752
        %v1767 = vpack.c.b16 %v1755, %v1754
        %v1768 = vpack.c.b16 %v1757, %v1756
        %v1769 = vpack.c.b16 %v1759, %v1758
        %v1770 = vpack.c.b16 %v1761, %v1760
        %v1771 = vpack.c.b16 %v1763, %v1762
        %1780 = vmatprep.subr.bf16.mxu0 0
        %1781 = vmatpush1.bf16.msra.mxu0 %v1771
        %1782 = vmatprep.subr.bf16.mxu0 0
        %1783 = vmatpush1.bf16.msra.mxu0 %v1770
        %1784 = vmatprep.subr.bf16.mxu0 0
        %1785 = vmatpush1.bf16.msra.mxu0 %v1769
        %1786 = vmatprep.subr.bf16.mxu0 0
        %1787 = vmatpush1.bf16.msra.mxu0 %v1768
        %1788 = vmatprep.subr.bf16.mxu0 0
        %1789 = vmatpush1.bf16.msra.mxu0 %v1767
        %1790 = vmatprep.subr.bf16.mxu0 0
        %1791 = vmatpush1.bf16.msra.mxu0 %v1766
        %1792 = vmatprep.subr.bf16.mxu0 0
        %1793 = vmatpush1.bf16.msra.mxu0 %v1765
        %1794 = vmatprep.subr.bf16.mxu0 0
        %1795 = vmatpush1.bf16.msra.mxu0 %v1764
        %1796 = vmatprep.subr.bf16.mxu0 0
        %1797 = vmatpush2.bf16.msra.mxu0 0
        %1798 = vmatprep.subr.bf16.mxu0 0
        %1799 = vmatpush2.bf16.msra.mxu0 0
        %1800 = vmatprep.subr.bf16.mxu0 0
        %1801 = vmatpush2.bf16.msra.mxu0 0
        %1802 = vmatprep.subr.bf16.mxu0 0
        %1803 = vmatpush2.bf16.msra.mxu0 0
        %1804 = vmatprep.subr.bf16.mxu0 0
        %1805 = vmatpush2.bf16.msra.mxu0 0
        %1806 = vmatprep.subr.bf16.mxu0 0
        %1807 = vmatpush2.bf16.msra.mxu0 0
        %1808 = vmatprep.subr.bf16.mxu0 0
        %1809 = vmatpush2.bf16.msra.mxu0 0
        %1810 = vmatprep.subr.bf16.mxu0 0
        %1811 = vmatpush2.bf16.msra.mxu0 0
        %1812 = vmatprep.mubr.bf16.mxu0 0
        %1813 = vmatmul.mubr.bf16.gmra.mxu0 %v1020
        %v1814 = vpop.f32.mrf.mxu0
        %v1815 = vadd.f32 0.0, %v1814
        %v1816 = vpop.f32.mrf.mxu0
        %v1817 = vpop.f32.mrf.mxu0
        %v1818 = vpop.f32.mrf.mxu0
        %1819 = vdwg.mxu0
        %v1836 = vunpack.c.l.b16 %v477
        %v1837 = vunpack.c.l.b16 %v478
        %v1838 = vunpack.c.l.b16 %v479
        %v1839 = vunpack.c.l.b16 %v480
        %v1840 = vunpack.c.l.b16 %v481
        %v1841 = vunpack.c.l.b16 %v482
        %v1842 = vunpack.c.l.b16 %v483
        %v1843 = vunpack.c.l.b16 %v484
        %v1844 = vunpack.c.l.b16 %v485
        %v1845 = vunpack.c.l.b16 %v486
        %v1846 = vunpack.c.l.b16 %v487
        %v1847 = vunpack.c.l.b16 %v488
        %v1848 = vunpack.c.l.b16 %v489
        %v1849 = vunpack.c.l.b16 %v490
        %v1850 = vunpack.c.l.b16 %v491
        %v1851 = vunpack.c.l.b16 %v492
        %v1852 = vpack.c.b16 %v1837, %v1836
        %v1853 = vpack.c.b16 %v1839, %v1838
        %v1854 = vpack.c.b16 %v1841, %v1840
        %v1855 = vpack.c.b16 %v1843, %v1842
        %v1856 = vpack.c.b16 %v1845, %v1844
        %v1857 = vpack.c.b16 %v1847, %v1846
        %v1858 = vpack.c.b16 %v1849, %v1848
        %v1859 = vpack.c.b16 %v1851, %v1850
        %1868 = vmatprep.subr.bf16.mxu0 0
        %1869 = vmatpush1.bf16.msra.mxu0 %v1859
        %1870 = vmatprep.subr.bf16.mxu0 0
        %1871 = vmatpush1.bf16.msra.mxu0 %v1858
        %1872 = vmatprep.subr.bf16.mxu0 0
        %1873 = vmatpush1.bf16.msra.mxu0 %v1857
        %1874 = vmatprep.subr.bf16.mxu0 0
        %1875 = vmatpush1.bf16.msra.mxu0 %v1856
        %1876 = vmatprep.subr.bf16.mxu0 0
        %1877 = vmatpush1.bf16.msra.mxu0 %v1855
        %1878 = vmatprep.subr.bf16.mxu0 0
        %1879 = vmatpush1.bf16.msra.mxu0 %v1854
        %1880 = vmatprep.subr.bf16.mxu0 0
        %1881 = vmatpush1.bf16.msra.mxu0 %v1853
        %1882 = vmatprep.subr.bf16.mxu0 0
        %1883 = vmatpush1.bf16.msra.mxu0 %v1852
        %1884 = vmatprep.subr.bf16.mxu0 0
        %1885 = vmatpush2.bf16.msra.mxu0 0
        %1886 = vmatprep.subr.bf16.mxu0 0
        %1887 = vmatpush2.bf16.msra.mxu0 0
        %1888 = vmatprep.subr.bf16.mxu0 0
        %1889 = vmatpush2.bf16.msra.mxu0 0
        %1890 = vmatprep.subr.bf16.mxu0 0
        %1891 = vmatpush2.bf16.msra.mxu0 0
        %1892 = vmatprep.subr.bf16.mxu0 0
        %1893 = vmatpush2.bf16.msra.mxu0 0
        %1894 = vmatprep.subr.bf16.mxu0 0
        %1895 = vmatpush2.bf16.msra.mxu0 0
        %1896 = vmatprep.subr.bf16.mxu0 0
        %1897 = vmatpush2.bf16.msra.mxu0 0
        %1898 = vmatprep.subr.bf16.mxu0 0
        %1899 = vmatpush2.bf16.msra.mxu0 0
        %1900 = vmatprep.mubr.bf16.mxu0 0
        %1901 = vmatmul.mubr.bf16.gmra.mxu0 %v1021
        %v1902 = vpop.f32.mrf.mxu0
        %v1903 = vadd.f32 0.0, %v1902
        %v1904 = vpop.f32.mrf.mxu0
        %v1905 = vpop.f32.mrf.mxu0
        %v1906 = vpop.f32.mrf.mxu0
        %1907 = vdwg.mxu0
        %v1924 = vunpack.c.l.b16 %v493
        %v1925 = vunpack.c.l.b16 %v494
        %v1926 = vunpack.c.l.b16 %v495
        %v1927 = vunpack.c.l.b16 %v496
        %v1928 = vunpack.c.l.b16 %v497
        %v1929 = vunpack.c.l.b16 %v498
        %v1930 = vunpack.c.l.b16 %v499
        %v1931 = vunpack.c.l.b16 %v500
        %v1932 = vunpack.c.l.b16 %v501
        %v1933 = vunpack.c.l.b16 %v502
        %v1934 = vunpack.c.l.b16 %v503
        %v1935 = vunpack.c.l.b16 %v504
        %v1936 = vunpack.c.l.b16 %v505
        %v1937 = vunpack.c.l.b16 %v506
        %v1938 = vunpack.c.l.b16 %v507
        %v1939 = vunpack.c.l.b16 %v508
        %v1940 = vpack.c.b16 %v1925, %v1924
        %v1941 = vpack.c.b16 %v1927, %v1926
        %v1942 = vpack.c.b16 %v1929, %v1928
        %v1943 = vpack.c.b16 %v1931, %v1930
        %v1944 = vpack.c.b16 %v1933, %v1932
        %v1945 = vpack.c.b16 %v1935, %v1934
        %v1946 = vpack.c.b16 %v1937, %v1936
        %v1947 = vpack.c.b16 %v1939, %v1938
        %1956 = vmatprep.subr.bf16.mxu0 0
        %1957 = vmatpush1.bf16.msra.mxu0 %v1947
        %1958 = vmatprep.subr.bf16.mxu0 0
        %1959 = vmatpush1.bf16.msra.mxu0 %v1946
        %1960 = vmatprep.subr.bf16.mxu0 0
        %1961 = vmatpush1.bf16.msra.mxu0 %v1945
        %1962 = vmatprep.subr.bf16.mxu0 0
        %1963 = vmatpush1.bf16.msra.mxu0 %v1944
        %1964 = vmatprep.subr.bf16.mxu0 0
        %1965 = vmatpush1.bf16.msra.mxu0 %v1943
        %1966 = vmatprep.subr.bf16.mxu0 0
        %1967 = vmatpush1.bf16.msra.mxu0 %v1942
        %1968 = vmatprep.subr.bf16.mxu0 0
        %1969 = vmatpush1.bf16.msra.mxu0 %v1941
        %1970 = vmatprep.subr.bf16.mxu0 0
        %1971 = vmatpush1.bf16.msra.mxu0 %v1940
        %1972 = vmatprep.subr.bf16.mxu0 0
        %1973 = vmatpush2.bf16.msra.mxu0 0
        %1974 = vmatprep.subr.bf16.mxu0 0
        %1975 = vmatpush2.bf16.msra.mxu0 0
        %1976 = vmatprep.subr.bf16.mxu0 0
        %1977 = vmatpush2.bf16.msra.mxu0 0
        %1978 = vmatprep.subr.bf16.mxu0 0
        %1979 = vmatpush2.bf16.msra.mxu0 0
        %1980 = vmatprep.subr.bf16.mxu0 0
        %1981 = vmatpush2.bf16.msra.mxu0 0
        %1982 = vmatprep.subr.bf16.mxu0 0
        %1983 = vmatpush2.bf16.msra.mxu0 0
        %1984 = vmatprep.subr.bf16.mxu0 0
        %1985 = vmatpush2.bf16.msra.mxu0 0
        %1986 = vmatprep.subr.bf16.mxu0 0
        %1987 = vmatpush2.bf16.msra.mxu0 0
        %1988 = vmatprep.mubr.bf16.mxu0 0
        %1989 = vmatmul.mubr.bf16.gmra.mxu0 %v1022
        %v1990 = vpop.f32.mrf.mxu0
        %v1991 = vadd.f32 0.0, %v1990
        %v1992 = vpop.f32.mrf.mxu0
        %v1993 = vpop.f32.mrf.mxu0
        %v1994 = vpop.f32.mrf.mxu0
        %1995 = vdwg.mxu0
        %v2012 = vunpack.c.l.b16 %v509
        %v2013 = vunpack.c.l.b16 %v510
        %v2014 = vunpack.c.l.b16 %v511
        %v2015 = vunpack.c.l.b16 %v512
        %v2016 = vunpack.c.l.b16 %v513
        %v2017 = vunpack.c.l.b16 %v514
        %v2018 = vunpack.c.l.b16 %v515
        %v2019 = vunpack.c.l.b16 %v516
        %v2020 = vunpack.c.l.b16 %v517
        %v2021 = vunpack.c.l.b16 %v518
        %v2022 = vunpack.c.l.b16 %v519
        %v2023 = vunpack.c.l.b16 %v520
        %v2024 = vunpack.c.l.b16 %v521
        %v2025 = vunpack.c.l.b16 %v522
        %v2026 = vunpack.c.l.b16 %v523
        %v2027 = vunpack.c.l.b16 %v524
        %v2028 = vpack.c.b16 %v2013, %v2012
        %v2029 = vpack.c.b16 %v2015, %v2014
        %v2030 = vpack.c.b16 %v2017, %v2016
        %v2031 = vpack.c.b16 %v2019, %v2018
        %v2032 = vpack.c.b16 %v2021, %v2020
        %v2033 = vpack.c.b16 %v2023, %v2022
        %v2034 = vpack.c.b16 %v2025, %v2024
        %v2035 = vpack.c.b16 %v2027, %v2026
        %2044 = vmatprep.subr.bf16.mxu0 0
        %2045 = vmatpush1.bf16.msra.mxu0 %v2035
        %2046 = vmatprep.subr.bf16.mxu0 0
        %2047 = vmatpush1.bf16.msra.mxu0 %v2034
        %2048 = vmatprep.subr.bf16.mxu0 0
        %2049 = vmatpush1.bf16.msra.mxu0 %v2033
        %2050 = vmatprep.subr.bf16.mxu0 0
        %2051 = vmatpush1.bf16.msra.mxu0 %v2032
        %2052 = vmatprep.subr.bf16.mxu0 0
        %2053 = vmatpush1.bf16.msra.mxu0 %v2031
        %2054 = vmatprep.subr.bf16.mxu0 0
        %2055 = vmatpush1.bf16.msra.mxu0 %v2030
        %2056 = vmatprep.subr.bf16.mxu0 0
        %2057 = vmatpush1.bf16.msra.mxu0 %v2029
        %2058 = vmatprep.subr.bf16.mxu0 0
        %2059 = vmatpush1.bf16.msra.mxu0 %v2028
        %2060 = vmatprep.subr.bf16.mxu0 0
        %2061 = vmatpush2.bf16.msra.mxu0 0
        %2062 = vmatprep.subr.bf16.mxu0 0
        %2063 = vmatpush2.bf16.msra.mxu0 0
        %2064 = vmatprep.subr.bf16.mxu0 0
        %2065 = vmatpush2.bf16.msra.mxu0 0
        %2066 = vmatprep.subr.bf16.mxu0 0
        %2067 = vmatpush2.bf16.msra.mxu0 0
        %2068 = vmatprep.subr.bf16.mxu0 0
        %2069 = vmatpush2.bf16.msra.mxu0 0
        %2070 = vmatprep.subr.bf16.mxu0 0
        %2071 = vmatpush2.bf16.msra.mxu0 0
        %2072 = vmatprep.subr.bf16.mxu0 0
        %2073 = vmatpush2.bf16.msra.mxu0 0
        %2074 = vmatprep.subr.bf16.mxu0 0
        %2075 = vmatpush2.bf16.msra.mxu0 0
        %2076 = vmatprep.mubr.bf16.mxu0 0
        %2077 = vmatmul.mubr.bf16.gmra.mxu0 %v1023
        %v2078 = vpop.f32.mrf.mxu0
        %v2079 = vadd.f32 0.0, %v2078
        %v2080 = vpop.f32.mrf.mxu0
        %v2081 = vpop.f32.mrf.mxu0
        %v2082 = vpop.f32.mrf.mxu0
        %2083 = vdwg.mxu0
        %v2100 = vunpack.c.l.b16 %v525
        %v2101 = vunpack.c.l.b16 %v526
        %v2102 = vunpack.c.l.b16 %v527
        %v2103 = vunpack.c.l.b16 %v528
        %v2104 = vunpack.c.l.b16 %v529
        %v2105 = vunpack.c.l.b16 %v530
        %v2106 = vunpack.c.l.b16 %v531
        %v2107 = vunpack.c.l.b16 %v532
        %v2108 = vunpack.c.l.b16 %v533
        %v2109 = vunpack.c.l.b16 %v534
        %v2110 = vunpack.c.l.b16 %v535
        %v2111 = vunpack.c.l.b16 %v536
        %v2112 = vunpack.c.l.b16 %v537
        %v2113 = vunpack.c.l.b16 %v538
        %v2114 = vunpack.c.l.b16 %v539
        %v2115 = vunpack.c.l.b16 %v540
        %v2116 = vpack.c.b16 %v2101, %v2100
        %v2117 = vpack.c.b16 %v2103, %v2102
        %v2118 = vpack.c.b16 %v2105, %v2104
        %v2119 = vpack.c.b16 %v2107, %v2106
        %v2120 = vpack.c.b16 %v2109, %v2108
        %v2121 = vpack.c.b16 %v2111, %v2110
        %v2122 = vpack.c.b16 %v2113, %v2112
        %v2123 = vpack.c.b16 %v2115, %v2114
        %2132 = vmatprep.subr.bf16.mxu0 0
        %2133 = vmatpush1.bf16.msra.mxu0 %v2123
        %2134 = vmatprep.subr.bf16.mxu0 0
        %2135 = vmatpush1.bf16.msra.mxu0 %v2122
        %2136 = vmatprep.subr.bf16.mxu0 0
        %2137 = vmatpush1.bf16.msra.mxu0 %v2121
        %2138 = vmatprep.subr.bf16.mxu0 0
        %2139 = vmatpush1.bf16.msra.mxu0 %v2120
        %2140 = vmatprep.subr.bf16.mxu0 0
        %2141 = vmatpush1.bf16.msra.mxu0 %v2119
        %2142 = vmatprep.subr.bf16.mxu0 0
        %2143 = vmatpush1.bf16.msra.mxu0 %v2118
        %2144 = vmatprep.subr.bf16.mxu0 0
        %2145 = vmatpush1.bf16.msra.mxu0 %v2117
        %2146 = vmatprep.subr.bf16.mxu0 0
        %2147 = vmatpush1.bf16.msra.mxu0 %v2116
        %2148 = vmatprep.subr.bf16.mxu0 0
        %2149 = vmatpush2.bf16.msra.mxu0 0
        %2150 = vmatprep.subr.bf16.mxu0 0
        %2151 = vmatpush2.bf16.msra.mxu0 0
        %2152 = vmatprep.subr.bf16.mxu0 0
        %2153 = vmatpush2.bf16.msra.mxu0 0
        %2154 = vmatprep.subr.bf16.mxu0 0
        %2155 = vmatpush2.bf16.msra.mxu0 0
        %2156 = vmatprep.subr.bf16.mxu0 0
        %2157 = vmatpush2.bf16.msra.mxu0 0
        %2158 = vmatprep.subr.bf16.mxu0 0
        %2159 = vmatpush2.bf16.msra.mxu0 0
        %2160 = vmatprep.subr.bf16.mxu0 0
        %2161 = vmatpush2.bf16.msra.mxu0 0
        %2162 = vmatprep.subr.bf16.mxu0 0
        %2163 = vmatpush2.bf16.msra.mxu0 0
        %2164 = vmatprep.mubr.bf16.mxu0 0
        %2165 = vmatmul.mubr.bf16.gmra.mxu0 %v1024
        %v2166 = vpop.f32.mrf.mxu0
        %v2167 = vadd.f32 0.0, %v2166
        %v2168 = vpop.f32.mrf.mxu0
        %v2169 = vpop.f32.mrf.mxu0
        %v2170 = vpop.f32.mrf.mxu0
        %2171 = vdwg.mxu0
        %v2188 = vunpack.c.l.b16 %v541
        %v2189 = vunpack.c.l.b16 %v542
        %v2190 = vunpack.c.l.b16 %v543
        %v2191 = vunpack.c.l.b16 %v544
        %v2192 = vunpack.c.l.b16 %v545
        %v2193 = vunpack.c.l.b16 %v546
        %v2194 = vunpack.c.l.b16 %v547
        %v2195 = vunpack.c.l.b16 %v548
        %v2196 = vunpack.c.l.b16 %v549
        %v2197 = vunpack.c.l.b16 %v550
        %v2198 = vunpack.c.l.b16 %v551
        %v2199 = vunpack.c.l.b16 %v552
        %v2200 = vunpack.c.l.b16 %v553
        %v2201 = vunpack.c.l.b16 %v554
        %v2202 = vunpack.c.l.b16 %v555
        %v2203 = vunpack.c.l.b16 %v556
        %v2204 = vpack.c.b16 %v2189, %v2188
        %v2205 = vpack.c.b16 %v2191, %v2190
        %v2206 = vpack.c.b16 %v2193, %v2192
        %v2207 = vpack.c.b16 %v2195, %v2194
        %v2208 = vpack.c.b16 %v2197, %v2196
        %v2209 = vpack.c.b16 %v2199, %v2198
        %v2210 = vpack.c.b16 %v2201, %v2200
        %v2211 = vpack.c.b16 %v2203, %v2202
        %2220 = vmatprep.subr.bf16.mxu0 0
        %2221 = vmatpush1.bf16.msra.mxu0 %v2211
        %2222 = vmatprep.subr.bf16.mxu0 0
        %2223 = vmatpush1.bf16.msra.mxu0 %v2210
        %2224 = vmatprep.subr.bf16.mxu0 0
        %2225 = vmatpush1.bf16.msra.mxu0 %v2209
        %2226 = vmatprep.subr.bf16.mxu0 0
        %2227 = vmatpush1.bf16.msra.mxu0 %v2208
        %2228 = vmatprep.subr.bf16.mxu0 0
        %2229 = vmatpush1.bf16.msra.mxu0 %v2207
        %2230 = vmatprep.subr.bf16.mxu0 0
        %2231 = vmatpush1.bf16.msra.mxu0 %v2206
        %2232 = vmatprep.subr.bf16.mxu0 0
        %2233 = vmatpush1.bf16.msra.mxu0 %v2205
        %2234 = vmatprep.subr.bf16.mxu0 0
        %2235 = vmatpush1.bf16.msra.mxu0 %v2204
        %2236 = vmatprep.subr.bf16.mxu0 0
        %2237 = vmatpush2.bf16.msra.mxu0 0
        %2238 = vmatprep.subr.bf16.mxu0 0
        %2239 = vmatpush2.bf16.msra.mxu0 0
        %2240 = vmatprep.subr.bf16.mxu0 0
        %2241 = vmatpush2.bf16.msra.mxu0 0
        %2242 = vmatprep.subr.bf16.mxu0 0
        %2243 = vmatpush2.bf16.msra.mxu0 0
        %2244 = vmatprep.subr.bf16.mxu0 0
        %2245 = vmatpush2.bf16.msra.mxu0 0
        %2246 = vmatprep.subr.bf16.mxu0 0
        %2247 = vmatpush2.bf16.msra.mxu0 0
        %2248 = vmatprep.subr.bf16.mxu0 0
        %2249 = vmatpush2.bf16.msra.mxu0 0
        %2250 = vmatprep.subr.bf16.mxu0 0
        %2251 = vmatpush2.bf16.msra.mxu0 0
        %2252 = vmatprep.mubr.bf16.mxu0 0
        %2253 = vmatmul.mubr.bf16.gmra.mxu0 %v1025
        %v2254 = vpop.f32.mrf.mxu0
        %v2255 = vadd.f32 0.0, %v2254
        %v2256 = vpop.f32.mrf.mxu0
        %v2257 = vpop.f32.mrf.mxu0
        %v2258 = vpop.f32.mrf.mxu0
        %2259 = vdwg.mxu0
        %v2276 = vunpack.c.l.b16 %v557
        %v2277 = vunpack.c.l.b16 %v558
        %v2278 = vunpack.c.l.b16 %v559
        %v2279 = vunpack.c.l.b16 %v560
        %v2280 = vunpack.c.l.b16 %v561
        %v2281 = vunpack.c.l.b16 %v562
        %v2282 = vunpack.c.l.b16 %v563
        %v2283 = vunpack.c.l.b16 %v564
        %v2284 = vunpack.c.l.b16 %v565
        %v2285 = vunpack.c.l.b16 %v566
        %v2286 = vunpack.c.l.b16 %v567
        %v2287 = vunpack.c.l.b16 %v568
        %v2288 = vunpack.c.l.b16 %v569
        %v2289 = vunpack.c.l.b16 %v570
        %v2290 = vunpack.c.l.b16 %v571
        %v2291 = vunpack.c.l.b16 %v572
        %v2292 = vpack.c.b16 %v2277, %v2276
        %v2293 = vpack.c.b16 %v2279, %v2278
        %v2294 = vpack.c.b16 %v2281, %v2280
        %v2295 = vpack.c.b16 %v2283, %v2282
        %v2296 = vpack.c.b16 %v2285, %v2284
        %v2297 = vpack.c.b16 %v2287, %v2286
        %v2298 = vpack.c.b16 %v2289, %v2288
        %v2299 = vpack.c.b16 %v2291, %v2290
        %2308 = vmatprep.subr.bf16.mxu0 0
        %2309 = vmatpush1.bf16.msra.mxu0 %v2299
        %2310 = vmatprep.subr.bf16.mxu0 0
        %2311 = vmatpush1.bf16.msra.mxu0 %v2298
        %2312 = vmatprep.subr.bf16.mxu0 0
        %2313 = vmatpush1.bf16.msra.mxu0 %v2297
        %2314 = vmatprep.subr.bf16.mxu0 0
        %2315 = vmatpush1.bf16.msra.mxu0 %v2296
        %2316 = vmatprep.subr.bf16.mxu0 0
        %2317 = vmatpush1.bf16.msra.mxu0 %v2295
        %2318 = vmatprep.subr.bf16.mxu0 0
        %2319 = vmatpush1.bf16.msra.mxu0 %v2294
        %2320 = vmatprep.subr.bf16.mxu0 0
        %2321 = vmatpush1.bf16.msra.mxu0 %v2293
        %2322 = vmatprep.subr.bf16.mxu0 0
        %2323 = vmatpush1.bf16.msra.mxu0 %v2292
        %2324 = vmatprep.subr.bf16.mxu0 0
        %2325 = vmatpush2.bf16.msra.mxu0 0
        %2326 = vmatprep.subr.bf16.mxu0 0
        %2327 = vmatpush2.bf16.msra.mxu0 0
        %2328 = vmatprep.subr.bf16.mxu0 0
        %2329 = vmatpush2.bf16.msra.mxu0 0
        %2330 = vmatprep.subr.bf16.mxu0 0
        %2331 = vmatpush2.bf16.msra.mxu0 0
        %2332 = vmatprep.subr.bf16.mxu0 0
        %2333 = vmatpush2.bf16.msra.mxu0 0
        %2334 = vmatprep.subr.bf16.mxu0 0
        %2335 = vmatpush2.bf16.msra.mxu0 0
        %2336 = vmatprep.subr.bf16.mxu0 0
        %2337 = vmatpush2.bf16.msra.mxu0 0
        %2338 = vmatprep.subr.bf16.mxu0 0
        %2339 = vmatpush2.bf16.msra.mxu0 0
        %2340 = vmatprep.mubr.bf16.mxu0 0
        %2341 = vmatmul.mubr.bf16.gmra.mxu0 %v1026
        %v2342 = vpop.f32.mrf.mxu0
        %v2343 = vadd.f32 0.0, %v2342
        %v2344 = vpop.f32.mrf.mxu0
        %v2345 = vpop.f32.mrf.mxu0
        %v2346 = vpop.f32.mrf.mxu0
        %2347 = vdwg.mxu0
        %v2364 = vunpack.c.l.b16 %v573
        %v2365 = vunpack.c.l.b16 %v574
        %v2366 = vunpack.c.l.b16 %v575
        %v2367 = vunpack.c.l.b16 %v576
        %v2368 = vunpack.c.l.b16 %v577
        %v2369 = vunpack.c.l.b16 %v578
        %v2370 = vunpack.c.l.b16 %v579
        %v2371 = vunpack.c.l.b16 %v580
        %v2372 = vunpack.c.l.b16 %v581
        %v2373 = vunpack.c.l.b16 %v582
        %v2374 = vunpack.c.l.b16 %v583
        %v2375 = vunpack.c.l.b16 %v584
        %v2376 = vunpack.c.l.b16 %v585
        %v2377 = vunpack.c.l.b16 %v586
        %v2378 = vunpack.c.l.b16 %v587
        %v2379 = vunpack.c.l.b16 %v588
        %v2380 = vpack.c.b16 %v2365, %v2364
        %v2381 = vpack.c.b16 %v2367, %v2366
        %v2382 = vpack.c.b16 %v2369, %v2368
        %v2383 = vpack.c.b16 %v2371, %v2370
        %v2384 = vpack.c.b16 %v2373, %v2372
        %v2385 = vpack.c.b16 %v2375, %v2374
        %v2386 = vpack.c.b16 %v2377, %v2376
        %v2387 = vpack.c.b16 %v2379, %v2378
        %2396 = vmatprep.subr.bf16.mxu0 0
        %2397 = vmatpush1.bf16.msra.mxu0 %v2387
        %2398 = vmatprep.subr.bf16.mxu0 0
        %2399 = vmatpush1.bf16.msra.mxu0 %v2386
        %2400 = vmatprep.subr.bf16.mxu0 0
        %2401 = vmatpush1.bf16.msra.mxu0 %v2385
        %2402 = vmatprep.subr.bf16.mxu0 0
        %2403 = vmatpush1.bf16.msra.mxu0 %v2384
        %2404 = vmatprep.subr.bf16.mxu0 0
        %2405 = vmatpush1.bf16.msra.mxu0 %v2383
        %2406 = vmatprep.subr.bf16.mxu0 0
        %2407 = vmatpush1.bf16.msra.mxu0 %v2382
        %2408 = vmatprep.subr.bf16.mxu0 0
        %2409 = vmatpush1.bf16.msra.mxu0 %v2381
        %2410 = vmatprep.subr.bf16.mxu0 0
        %2411 = vmatpush1.bf16.msra.mxu0 %v2380
        %2412 = vmatprep.subr.bf16.mxu0 0
        %2413 = vmatpush2.bf16.msra.mxu0 0
        %2414 = vmatprep.subr.bf16.mxu0 0
        %2415 = vmatpush2.bf16.msra.mxu0 0
        %2416 = vmatprep.subr.bf16.mxu0 0
        %2417 = vmatpush2.bf16.msra.mxu0 0
        %2418 = vmatprep.subr.bf16.mxu0 0
        %2419 = vmatpush2.bf16.msra.mxu0 0
        %2420 = vmatprep.subr.bf16.mxu0 0
        %2421 = vmatpush2.bf16.msra.mxu0 0
        %2422 = vmatprep.subr.bf16.mxu0 0
        %2423 = vmatpush2.bf16.msra.mxu0 0
        %2424 = vmatprep.subr.bf16.mxu0 0
        %2425 = vmatpush2.bf16.msra.mxu0 0
        %2426 = vmatprep.subr.bf16.mxu0 0
        %2427 = vmatpush2.bf16.msra.mxu0 0
        %2428 = vmatprep.mubr.bf16.mxu0 0
        %2429 = vmatmul.mubr.bf16.gmra.mxu0 %v1027
        %v2430 = vpop.f32.mrf.mxu0
        %v2431 = vadd.f32 0.0, %v2430
        %v2432 = vpop.f32.mrf.mxu0
        %v2433 = vpop.f32.mrf.mxu0
        %v2434 = vpop.f32.mrf.mxu0
        %2435 = vdwg.mxu0
        %v2436 = vld [vmem:[#allocation6] sm:$0x3]
        %vm2437 = vcmask 1041408
        %v2438 = vsel %vm2437, %v1111, 0.0
        %v2439 = vsel %vm2437, %v1199, 0.0
        %v2440 = vadd.f32 %v2438, %v2439
        %v2441 = vsel %vm2437, %v1287, 0.0
        %v2442 = vadd.f32 %v2440, %v2441
        %v2443 = vsel %vm2437, %v1375, 0.0
        %v2444 = vadd.f32 %v2442, %v2443
        %v2445 = vsel %vm2437, %v1463, 0.0
        %v2446 = vadd.f32 %v2444, %v2445
        %v2447 = vsel %vm2437, %v1551, 0.0
        %v2448 = vadd.f32 %v2446, %v2447
        %v2449 = vsel %vm2437, %v1639, 0.0
        %v2450 = vadd.f32 %v2448, %v2449
        %v2451 = vsel %vm2437, %v1727, 0.0
        %v2452 = vadd.f32 %v2450, %v2451
        %v2453 = vsel %vm2437, %v1815, 0.0
        %v2454 = vadd.f32 %v2452, %v2453
        %v2455 = vsel %vm2437, %v1903, 0.0
        %v2456 = vadd.f32 %v2454, %v2455
        %v2457 = vsel %vm2437, %v1991, 0.0
        %v2458 = vadd.f32 %v2456, %v2457
        %v2459 = vsel %vm2437, %v2079, 0.0
        %v2460 = vadd.f32 %v2458, %v2459
        %v2461 = vsel %vm2437, %v2167, 0.0
        %v2462 = vadd.f32 %v2460, %v2461
        %v2463 = vsel %vm2437, %v2255, 0.0
        %v2464 = vadd.f32 %v2462, %v2463
        %v2465 = vsel %vm2437, %v2343, 0.0
        %v2466 = vadd.f32 %v2464, %v2465
        %v2467 = vsel %vm2437, %v2431, 0.0
        %v2468 = vadd.f32 %v2466, %v2467
        %v2469 = vadd.f32 %v2436, %v2468
        %2470 = vst [vmem:[#allocation6] sm:$0x3] %v2469
        // Predicated region
        $region87: #{two_parallel_models_forward.1} parent=73 // pred_check
          %p2471 = pneg %p148
        $region88: #{two_parallel_models_forward.1} parent=73 // pred_check_branch
          %2473 = sbr.rel (%p2471) target = $region90
        $region89: #{two_parallel_models_forward.1} parent=73 // pred_region
          %s2475 = ssub.s32 32, 32
          %2476 = vsyncadd [#allocation5], %s2475
          %s2478 = sshll.u32 [#allocation6], 4
          %s2479 = int_to_ptr.vmem [resolvable:$true] %s2478
          %2481 = dma.vmem_to_hbm [thread:$0]  %s2479, 32, %s5, [#allocation5]
        $region90: #{two_parallel_models_forward.1} parent=73 // pred_fallthru
          _
        // Predicated region
        $region91: #{two_parallel_models_forward.1} parent=73 // pred_check
          %p2482 = pneg %p148
        $region92: #{two_parallel_models_forward.1} parent=73 // pred_check_branch
          %2484 = sbr.rel (%p2482) target = $region94
        $region93: #{two_parallel_models_forward.1} parent=73 // pred_region
          %2485 = dma.done [#allocation5], 32
        $region94: #{two_parallel_models_forward.1} parent=73 // pred_fallthru
          _
      $region74: #{two_parallel_models_forward.1} parent=5 // pred_fallthru
        _
      %p2486 = scmp.le.s32.totalorder 2, %s15
      // Predicated region
      $region95: #{two_parallel_models_forward.1} parent=5 // pred_check
        %p2487 = pneg %p2486
      $region96: #{two_parallel_models_forward.1} parent=5 // pred_check_branch
        %2489 = sbr.rel (%p2487) target = $region98
      $region97: #{two_parallel_models_forward.1} parent=5 // pred_region
        %s2490 = ssub.s32 %s15, 2
      $region98: #{two_parallel_models_forward.1} parent=5 // pred_fallthru
        _
    $region6: #{two_parallel_models_forward.1} parent=1 // loop_footer
      %s19 = sadd.s32 1, %s15
    $region7: #{two_parallel_models_forward.1} parent=1 // loop_footer_branch
      %14 = sbr.rel target = $region3
    $region8: #{two_parallel_models_forward.1} parent=1 // loop_exit
      _
    %2491 = vsyncpa [#allocation4], 1
    %s2492 = scalar_lea.sflag [#allocation4], 1
    %2493 = vsyncpa %s2492, 1
    %2494 = vsyncpa [#allocation5], 1
    %s2495 = scalar_lea.sflag [#allocation5], 1
    %2496 = vsyncpa %s2495, 1

</llo_original>
